<compile_context>
chip_gen: v5e
topology: v5e:2x2
jax: 0.10.0
libtpu: 0.0.40
codegen_flags: <defaults>
</compile_context>

<pallas_src>
import math

import jax
import jax.numpy as jnp
from jax.experimental import pallas as pl
from jax.experimental.pallas import tpu as pltpu


# Row indices inside the packed (n_vec, F) bias/LayerNorm slab.
_V_LN0G, _V_LN0B = 0, 1
_V_BQ, _V_BK, _V_BV, _V_BO = 2, 3, 4, 5
_V_LN1G, _V_LN1B = 6, 7
_V_B1 = 8
_V_B2, _V_LN2G, _V_LN2B = 9, 10, 11
_V_WCLS, _V_BCLS = 12, 13
_N_VEC = 14


# ---------------------------------------------------------------------------
# Pallas kernel: embeddings-LN -> fused-QKV attention -> FFN -> classifier
# ---------------------------------------------------------------------------
def summarizer_kernel(
    emb_ref,    # (Bt, L, H)  word+pos+type embedding sum (f32)
    mask_ref,   # (Bt, 1, L)  attention mask (1.0 = real token, 0.0 = pad)
    wqkv_ref,   # (H, 3H)     fused Q/K/V projection (bf16)
    wo_ref,     # (H, H)      attention output projection (bf16)
    w1_ref,     # (H, F)      FFN in (bf16)
    w2_ref,     # (F, H)      FFN out (bf16)
    vec_ref,    # (n_vec, F)  packed biases / LN gains / classifier row (f32)
    out_ref,    # (Bt, L)     per-position sigmoid scores (f32)
):
    Bt, L, H = emb_ref.shape
    F = w1_ref.shape[1]
    M = Bt * L

    vecs = vec_ref[...]                              # (n_vec, F) f32
    ln0g, ln0b = vecs[_V_LN0G:_V_LN0G + 1, :H], vecs[_V_LN0B:_V_LN0B + 1, :H]
    bq = vecs[_V_BQ:_V_BQ + 1, :H]
    bk = vecs[_V_BK:_V_BK + 1, :H]
    bv = vecs[_V_BV:_V_BV + 1, :H]
    bo = vecs[_V_BO:_V_BO + 1, :H]
    ln1g, ln1b = vecs[_V_LN1G:_V_LN1G + 1, :H], vecs[_V_LN1B:_V_LN1B + 1, :H]
    b1 = vecs[_V_B1:_V_B1 + 1, :F]
    b2 = vecs[_V_B2:_V_B2 + 1, :H]
    ln2g, ln2b = vecs[_V_LN2G:_V_LN2G + 1, :H], vecs[_V_LN2B:_V_LN2B + 1, :H]
    wcls = vecs[_V_WCLS:_V_WCLS + 1, :H]
    bcls = vecs[_V_BCLS:_V_BCLS + 1, 0:1]

    def layernorm(v, g, b, eps=1e-12):
        mu = jnp.mean(v, axis=-1, keepdims=True)
        var = jnp.mean(jnp.square(v - mu), axis=-1, keepdims=True)
        return (v - mu) * jax.lax.rsqrt(var + eps) * g + b

    # --- embedding LayerNorm (f32) ---
    x = emb_ref[...].reshape(M, H)                   # (M, H) f32
    x = layernorm(x, ln0g, ln0b)

    # --- fused Q/K/V projection: one (M, H) x (H, 3H) bf16 matmul ---
    qkv = jnp.dot(x.astype(jnp.bfloat16), wqkv_ref[...],
                  preferred_element_type=jnp.float32)          # (M, 3H) f32
    q = qkv[:, 0 * H:1 * H] + bq
    k = qkv[:, 1 * H:2 * H] + bk
    v = qkv[:, 2 * H:3 * H] + bv

    # --- batched single-head self-attention ---
    qb = q.reshape(Bt, L, H).astype(jnp.bfloat16)
    kb = k.reshape(Bt, L, H).astype(jnp.bfloat16)
    vb = v.reshape(Bt, L, H).astype(jnp.bfloat16)

    s = jnp.einsum('bqd,bkd->bqk', qb, kb,
                   preferred_element_type=jnp.float32)          # (Bt, L, L)
    s = s * (1.0 / math.sqrt(H))
    m = mask_ref[...]                                           # (Bt, 1, L)
    s = s + (1.0 - m) * (-1e9)                                  # mask pad keys

    s = s - jnp.max(s, axis=-1, keepdims=True)
    p = jnp.exp(s)
    p = p * pl.reciprocal(jnp.sum(p, axis=-1, keepdims=True), approx=True)

    a = jnp.einsum('bqk,bkd->bqd', p.astype(jnp.bfloat16), vb,
                   preferred_element_type=jnp.float32)          # (Bt, L, H)
    a = a.reshape(M, H)
    a = jnp.dot(a.astype(jnp.bfloat16), wo_ref[...],
                preferred_element_type=jnp.float32) + bo
    x1 = layernorm(x + a, ln1g, ln1b)

    # --- feed-forward (GELU, tanh approximation) ---
    h = jnp.dot(x1.astype(jnp.bfloat16), w1_ref[...],
                preferred_element_type=jnp.float32) + b1
    h = jax.nn.gelu(h, approximate=True)
    f = jnp.dot(h.astype(jnp.bfloat16), w2_ref[...],
                preferred_element_type=jnp.float32) + b2
    x2 = layernorm(x1 + f, ln2g, ln2b)

    # --- Classifier head: Linear(H, 1) -> sigmoid, fused per position ---
    logits = jnp.sum(x2 * wcls, axis=-1, keepdims=True) + bcls  # (M, 1)
    out_ref[...] = jax.nn.sigmoid(logits).reshape(Bt, L)


# ---------------------------------------------------------------------------
# Wrapper: embedding lookup (glue), weight packing, pallas_call, CLS gather
# ---------------------------------------------------------------------------
def _pick_batch_tile(B, L, max_rows=2048):
    """Largest batch tile Bt dividing B with Bt*L bounded (Bt==B or Bt%8==0)."""
    if B * L <= max_rows:
        return B
    cands = [d for d in range(1, B)
             if B % d == 0 and d % 8 == 0 and d * L <= max_rows]
    return max(cands) if cands else B


def _pack_vectors(params, H, F):
    """Pack all (1,H)/(1,F)/(1,1) vectors into one (n_vec, F) f32 slab."""
    def row(v):
        v = v.astype(jnp.float32)
        n = v.shape[-1]
        return v if n == F else jnp.pad(v, ((0, 0), (0, F - n)))
    rows = [
        params["ln0g"], params["ln0b"],
        params["bq"], params["bk"], params["bv"], params["bo"],
        params["ln1g"], params["ln1b"],
        params["b1"],
        params["b2"], params["ln2g"], params["ln2b"],
        params["wcls"], params["bcls"],
    ]
    assert len(rows) == _N_VEC
    return jnp.concatenate([row(r) for r in rows], axis=0)      # (n_vec, F)


def summarizer_scores(params, input_ids, input_mask, input_segment):
    """Per-position sigmoid scores, shape (B, L) float32."""
    B, L = input_ids.shape
    H = params["word_emb"].shape[-1]
    F = params["w1"].shape[-1]

    pos_ids = jnp.arange(L, dtype=jnp.int32)
    emb = (params["word_emb"][input_ids]
           + params["pos_emb"][pos_ids][None, :, :]
           + params["type_emb"][input_segment]).astype(jnp.float32)
    mask = input_mask.astype(jnp.float32).reshape(B, 1, L)

    # bf16 MXU operands; biases / LN vectors stay f32 in the packed slab.
    wqkv = jnp.concatenate(
        [params["wq"], params["wk"], params["wv"]], axis=1).astype(jnp.bfloat16)
    wo = params["wo"].astype(jnp.bfloat16)
    w1 = params["w1"].astype(jnp.bfloat16)
    w2 = params["w2"].astype(jnp.bfloat16)
    vecs = _pack_vectors(params, H, F)

    Bt = _pick_batch_tile(B, L)
    grid = (B // Bt,)

    in_specs = [
        pl.BlockSpec((Bt, L, H), lambda b: (b, 0, 0)),   # embeddings
        pl.BlockSpec((Bt, 1, L), lambda b: (b, 0, 0)),   # attention mask
        pl.BlockSpec(wqkv.shape, lambda b: (0, 0)),      # fused QKV weight
        pl.BlockSpec(wo.shape, lambda b: (0, 0)),
        pl.BlockSpec(w1.shape, lambda b: (0, 0)),
        pl.BlockSpec(w2.shape, lambda b: (0, 0)),
        pl.BlockSpec(vecs.shape, lambda b: (0, 0)),      # packed bias/LN slab
    ]
    out_spec = pl.BlockSpec((Bt, L), lambda b: (b, 0))   # lane-dense output

    scores = pl.pallas_call(
        summarizer_kernel,
        grid=grid,
        in_specs=in_specs,
        out_specs=out_spec,
        out_shape=jax.ShapeDtypeStruct((B, L), jnp.float32),
        compiler_params=pltpu.CompilerParams(
            dimension_semantics=("parallel",)),
    )(emb, mask, wqkv, wo, w1, w2, vecs)

    return scores


def summarizer_forward(params, input_ids, input_mask, input_segment, bos_id,
                       max_cls):
    """Equivalent of Summarizer.forward: scores at CLS positions, flattened.

    `max_cls` is a static bound on the number of CLS tokens in the batch so no
    host synchronization is needed (pass the exact count for exact semantics).
    """
    scores = summarizer_scores(params, input_ids, input_mask, input_segment)
    cls_mask = (input_ids == bos_id).reshape(-1)
    flat_idx = jnp.nonzero(cls_mask, size=max_cls, fill_value=0)[0]
    return scores.reshape(-1)[flat_idx]


# ---------------------------------------------------------------------------
# Deterministic parameter init (synthetic surrogate for the BERT backbone)
# ---------------------------------------------------------------------------
def init_params(key, vocab_size, article_len, hidden, ffn):
    ks = jax.random.split(key, 12)
    n = lambda k, shape: jax.random.normal(k, shape, jnp.float32) * 0.02
    H, F, L = hidden, ffn, article_len
    return {
        "word_emb": n(ks[0], (vocab_size, H)),
        "pos_emb":  n(ks[1], (L, H)),
        "type_emb": n(ks[2], (2, H)),
        "ln0g": jnp.ones((1, H), jnp.float32), "ln0b": jnp.zeros((1, H), jnp.float32),
        "wq": n(ks[3], (H, H)), "bq": jnp.zeros((1, H), jnp.float32),
        "wk": n(ks[4], (H, H)), "bk": jnp.zeros((1, H), jnp.float32),
        "wv": n(ks[5], (H, H)), "bv": jnp.zeros((1, H), jnp.float32),
        "wo": n(ks[6], (H, H)), "bo": jnp.zeros((1, H), jnp.float32),
        "ln1g": jnp.ones((1, H), jnp.float32), "ln1b": jnp.zeros((1, H), jnp.float32),
        "w1": n(ks[7], (H, F)), "b1": jnp.zeros((1, F), jnp.float32),
        "w2": n(ks[8], (F, H)), "b2": jnp.zeros((1, H), jnp.float32),
        "ln2g": jnp.ones((1, H), jnp.float32), "ln2b": jnp.zeros((1, H), jnp.float32),
        "wcls": n(ks[9], (1, H)), "bcls": jnp.zeros((1, 1), jnp.float32),
    }


if __name__ == "__main__":
    B, L, H, F = 2, 16, 128, 256        # H = full lane width (128)
    VOCAB = 64
    BOS_ID = 1          # artBOS / [CLS]
    PAD_ID = 0

    key = jax.random.PRNGKey(0)
    k_param, k_ids = jax.random.split(key)

    params = init_params(k_param, VOCAB, L, H, F)

    # Deterministic synthetic inputs: a few [CLS] tokens per example, some pad.
    input_ids = jax.random.randint(k_ids, (B, L), 2, VOCAB, dtype=jnp.int32)
    input_ids = input_ids.at[:, 0].set(BOS_ID)
    input_ids = input_ids.at[:, 5].set(BOS_ID)
    input_ids = input_ids.at[:, 10].set(BOS_ID)
    input_ids = input_ids.at[:, L - 2:].set(PAD_ID)

    input_mask = (input_ids != PAD_ID).astype(jnp.int32)
    input_segment = jnp.zeros((B, L), dtype=jnp.int32)

    n_cls = 3 * B       # 3 CLS tokens per example by construction
    draft_logprobs = summarizer_forward(
        params, input_ids, input_mask, input_segment, BOS_ID, max_cls=n_cls)
    jax.block_until_ready(draft_logprobs)

    assert draft_logprobs.shape == (n_cls,)
    assert bool(jnp.all(jnp.isfinite(draft_logprobs)))
    assert bool(jnp.all((draft_logprobs > 0) & (draft_logprobs < 1)))
    print("KERNEL_OK")
</pallas_src>

<mosaic_0001>
module attributes {stable_mosaic.version = 11 : i64} {
  func.func @summarizer_kernel(%arg0: i32, %arg1: memref<2x16x128xf32, #tpu.memory_space<vmem>>, %arg2: memref<2x1x16xf32, #tpu.memory_space<vmem>>, %arg3: memref<128x384xbf16, #tpu.memory_space<vmem>>, %arg4: memref<128x128xbf16, #tpu.memory_space<vmem>>, %arg5: memref<128x256xbf16, #tpu.memory_space<vmem>>, %arg6: memref<256x128xbf16, #tpu.memory_space<vmem>>, %arg7: memref<14x256xf32, #tpu.memory_space<vmem>>, %arg8: memref<2x16xf32, #tpu.memory_space<vmem>>) attributes {dimension_semantics = [#tpu.dimension_semantics<parallel>], iteration_bounds = array<i64: 1>, scalar_prefetch = 0 : i64, scratch_operands = 0 : i64, tpu.core_type = #tpu.core_type<tc>, window_params = [{transform_indices = @transform_0, window_bounds = array<i64: 2, 16, 128>}, {transform_indices = @transform_1, window_bounds = array<i64: 2, 1, 16>}, {pipeline_mode = #tpu.pipeline_mode<synchronous>, transform_indices = @transform_2, window_bounds = array<i64: 128, 384>}, {pipeline_mode = #tpu.pipeline_mode<synchronous>, transform_indices = @transform_3, window_bounds = array<i64: 128, 128>}, {pipeline_mode = #tpu.pipeline_mode<synchronous>, transform_indices = @transform_4, window_bounds = array<i64: 128, 256>}, {pipeline_mode = #tpu.pipeline_mode<synchronous>, transform_indices = @transform_5, window_bounds = array<i64: 256, 128>}, {pipeline_mode = #tpu.pipeline_mode<synchronous>, transform_indices = @transform_6, window_bounds = array<i64: 14, 256>}, {transform_indices = @transform_7, window_bounds = array<i64: 2, 16>}]} {
    %c0 = arith.constant 0 : index
    %c0_0 = arith.constant 0 : index
    %0 = vector.load %arg7[%c0, %c0_0] : memref<14x256xf32, #tpu.memory_space<vmem>>, vector<14x256xf32>
    %1 = vector.extract_strided_slice %0 {offsets = [0, 0], sizes = [1, 128], strides = [1, 1]} : vector<14x256xf32> to vector<1x128xf32>
    %2 = vector.extract_strided_slice %0 {offsets = [1, 0], sizes = [1, 128], strides = [1, 1]} : vector<14x256xf32> to vector<1x128xf32>
    %3 = vector.extract_strided_slice %0 {offsets = [2, 0], sizes = [1, 128], strides = [1, 1]} : vector<14x256xf32> to vector<1x128xf32>
    %4 = vector.extract_strided_slice %0 {offsets = [3, 0], sizes = [1, 128], strides = [1, 1]} : vector<14x256xf32> to vector<1x128xf32>
    %5 = vector.extract_strided_slice %0 {offsets = [4, 0], sizes = [1, 128], strides = [1, 1]} : vector<14x256xf32> to vector<1x128xf32>
    %6 = vector.extract_strided_slice %0 {offsets = [5, 0], sizes = [1, 128], strides = [1, 1]} : vector<14x256xf32> to vector<1x128xf32>
    %7 = vector.extract_strided_slice %0 {offsets = [6, 0], sizes = [1, 128], strides = [1, 1]} : vector<14x256xf32> to vector<1x128xf32>
    %8 = vector.extract_strided_slice %0 {offsets = [7, 0], sizes = [1, 128], strides = [1, 1]} : vector<14x256xf32> to vector<1x128xf32>
    %9 = vector.extract_strided_slice %0 {offsets = [8, 0], sizes = [1, 256], strides = [1, 1]} : vector<14x256xf32> to vector<1x256xf32>
    %10 = vector.extract_strided_slice %0 {offsets = [9, 0], sizes = [1, 128], strides = [1, 1]} : vector<14x256xf32> to vector<1x128xf32>
    %11 = vector.extract_strided_slice %0 {offsets = [10, 0], sizes = [1, 128], strides = [1, 1]} : vector<14x256xf32> to vector<1x128xf32>
    %12 = vector.extract_strided_slice %0 {offsets = [11, 0], sizes = [1, 128], strides = [1, 1]} : vector<14x256xf32> to vector<1x128xf32>
    %13 = vector.extract_strided_slice %0 {offsets = [12, 0], sizes = [1, 128], strides = [1, 1]} : vector<14x256xf32> to vector<1x128xf32>
    %14 = vector.extract_strided_slice %0 {offsets = [13, 0], sizes = [1, 1], strides = [1, 1]} : vector<14x256xf32> to vector<1x1xf32>
    %c0_1 = arith.constant 0 : index
    %c0_2 = arith.constant 0 : index
    %c0_3 = arith.constant 0 : index
    %15 = vector.load %arg1[%c0_1, %c0_2, %c0_3] : memref<2x16x128xf32, #tpu.memory_space<vmem>>, vector<2x16x128xf32>
    %16 = vector.shape_cast %15 : vector<2x16x128xf32> to vector<32x128xf32>
    %cst = arith.constant dense<0.000000e+00> : vector<32xf32>
    %17 = vector.multi_reduction <add>, %16, %cst [1] : vector<32x128xf32> to vector<32xf32>
    %18 = vector.shape_cast %17 : vector<32xf32> to vector<32x1xf32>
    %cst_4 = arith.constant 1.280000e+02 : f32
    %19 = vector.broadcast %cst_4 : f32 to vector<32x1xf32>
    %20 = arith.divf %18, %19 : vector<32x1xf32>
    %21 = vector.broadcast %20 : vector<32x1xf32> to vector<32x128xf32>
    %22 = arith.subf %16, %21 : vector<32x128xf32>
    %23 = arith.mulf %22, %22 : vector<32x128xf32>
    %cst_5 = arith.constant dense<0.000000e+00> : vector<32xf32>
    %24 = vector.multi_reduction <add>, %23, %cst_5 [1] : vector<32x128xf32> to vector<32xf32>
    %25 = vector.shape_cast %24 : vector<32xf32> to vector<32x1xf32>
    %cst_6 = arith.constant 1.280000e+02 : f32
    %26 = vector.broadcast %cst_6 : f32 to vector<32x1xf32>
    %27 = arith.divf %25, %26 : vector<32x1xf32>
    %28 = vector.broadcast %20 : vector<32x1xf32> to vector<32x128xf32>
    %29 = arith.subf %16, %28 : vector<32x128xf32>
    %cst_7 = arith.constant 9.99999996E-13 : f32
    %30 = vector.broadcast %cst_7 : f32 to vector<32x1xf32>
    %31 = arith.addf %27, %30 : vector<32x1xf32>
    %32 = math.rsqrt %31 : vector<32x1xf32>
    %33 = vector.broadcast %32 : vector<32x1xf32> to vector<32x128xf32>
    %34 = arith.mulf %29, %33 : vector<32x128xf32>
    %35 = vector.broadcast %1 : vector<1x128xf32> to vector<32x128xf32>
    %36 = arith.mulf %34, %35 : vector<32x128xf32>
    %37 = vector.broadcast %2 : vector<1x128xf32> to vector<32x128xf32>
    %38 = arith.addf %36, %37 : vector<32x128xf32>
    %39 = arith.truncf %38 : vector<32x128xf32> to vector<32x128xbf16>
    %c0_8 = arith.constant 0 : index
    %c0_9 = arith.constant 0 : index
    %40 = vector.load %arg3[%c0_8, %c0_9] : memref<128x384xbf16, #tpu.memory_space<vmem>>, vector<128x384xbf16>
    %cst_10 = arith.constant dense<0.000000e+00> : vector<32x384xf32>
    %41 = tpu.matmul %39, %40, %cst_10 {dimension_numbers = #tpu.dot_dimension_numbers<[1], [0], [0], [1], [0, 0, 1, 1], [], []>} : vector<32x128xbf16>, vector<128x384xbf16>, vector<32x384xf32> -> vector<32x384xf32>
    %42 = vector.extract_strided_slice %41 {offsets = [0, 0], sizes = [32, 128], strides = [1, 1]} : vector<32x384xf32> to vector<32x128xf32>
    %43 = vector.broadcast %3 : vector<1x128xf32> to vector<32x128xf32>
    %44 = arith.addf %42, %43 : vector<32x128xf32>
    %45 = vector.extract_strided_slice %41 {offsets = [0, 128], sizes = [32, 128], strides = [1, 1]} : vector<32x384xf32> to vector<32x128xf32>
    %46 = vector.broadcast %4 : vector<1x128xf32> to vector<32x128xf32>
    %47 = arith.addf %45, %46 : vector<32x128xf32>
    %48 = vector.extract_strided_slice %41 {offsets = [0, 256], sizes = [32, 128], strides = [1, 1]} : vector<32x384xf32> to vector<32x128xf32>
    %49 = vector.broadcast %5 : vector<1x128xf32> to vector<32x128xf32>
    %50 = arith.addf %48, %49 : vector<32x128xf32>
    %51 = vector.shape_cast %44 : vector<32x128xf32> to vector<2x16x128xf32>
    %52 = arith.truncf %51 : vector<2x16x128xf32> to vector<2x16x128xbf16>
    %53 = vector.shape_cast %47 : vector<32x128xf32> to vector<2x16x128xf32>
    %54 = arith.truncf %53 : vector<2x16x128xf32> to vector<2x16x128xbf16>
    %55 = vector.shape_cast %50 : vector<32x128xf32> to vector<2x16x128xf32>
    %56 = arith.truncf %55 : vector<2x16x128xf32> to vector<2x16x128xbf16>
    "tpu.trace_start"() <{level = 10 : i32, message = "bqd,bkd->bqk"}> : () -> ()
    %cst_11 = arith.constant dense<0.000000e+00> : vector<2x16x16xf32>
    %57 = tpu.matmul %52, %54, %cst_11 {dimension_numbers = #tpu.dot_dimension_numbers<[2], [2], [1], [1], [0, 0, 0, 1, 1, 1], [0], [0]>} : vector<2x16x128xbf16>, vector<2x16x128xbf16>, vector<2x16x16xf32> -> vector<2x16x16xf32>
    "tpu.trace_stop"() : () -> ()
    %cst_12 = arith.constant 0.0883883461 : f32
    %58 = vector.broadcast %cst_12 : f32 to vector<2x16x16xf32>
    %59 = arith.mulf %57, %58 : vector<2x16x16xf32>
    %c0_13 = arith.constant 0 : index
    %c0_14 = arith.constant 0 : index
    %c0_15 = arith.constant 0 : index
    %60 = vector.load %arg2[%c0_13, %c0_14, %c0_15] : memref<2x1x16xf32, #tpu.memory_space<vmem>>, vector<2x1x16xf32>
    %cst_16 = arith.constant 1.000000e+00 : f32
    %61 = vector.broadcast %cst_16 : f32 to vector<2x1x16xf32>
    %62 = arith.subf %61, %60 : vector<2x1x16xf32>
    %cst_17 = arith.constant -1.000000e+09 : f32
    %63 = vector.broadcast %cst_17 : f32 to vector<2x1x16xf32>
    %64 = arith.mulf %62, %63 : vector<2x1x16xf32>
    %65 = vector.broadcast %64 : vector<2x1x16xf32> to vector<2x16x16xf32>
    %66 = arith.addf %59, %65 : vector<2x16x16xf32>
    %cst_18 = arith.constant dense<0xFF800000> : vector<2x16xf32>
    %67 = vector.multi_reduction <maximumf>, %66, %cst_18 [2] : vector<2x16x16xf32> to vector<2x16xf32>
    %68 = vector.shape_cast %67 : vector<2x16xf32> to vector<2x16x1xf32>
    %69 = vector.broadcast %68 : vector<2x16x1xf32> to vector<2x16x16xf32>
    %70 = arith.subf %66, %69 : vector<2x16x16xf32>
    %71 = math.exp %70 : vector<2x16x16xf32>
    %cst_19 = arith.constant dense<0.000000e+00> : vector<2x16xf32>
    %72 = vector.multi_reduction <add>, %71, %cst_19 [2] : vector<2x16x16xf32> to vector<2x16xf32>
    %73 = vector.shape_cast %72 : vector<2x16xf32> to vector<2x16x1xf32>
    %74 = tpu.reciprocal %73 {approx = true} : vector<2x16x1xf32> -> vector<2x16x1xf32>
    %75 = vector.broadcast %74 : vector<2x16x1xf32> to vector<2x16x16xf32>
    %76 = arith.mulf %71, %75 : vector<2x16x16xf32>
    %77 = arith.truncf %76 : vector<2x16x16xf32> to vector<2x16x16xbf16>
    "tpu.trace_start"() <{level = 10 : i32, message = "bqk,bkd->bqd"}> : () -> ()
    %cst_20 = arith.constant dense<0.000000e+00> : vector<2x16x128xf32>
    %78 = tpu.matmul %77, %56, %cst_20 {dimension_numbers = #tpu.dot_dimension_numbers<[2], [1], [1], [2], [0, 0, 0, 1, 1, 2], [0], [0]>} : vector<2x16x16xbf16>, vector<2x16x128xbf16>, vector<2x16x128xf32> -> vector<2x16x128xf32>
    "tpu.trace_stop"() : () -> ()
    %79 = vector.shape_cast %78 : vector<2x16x128xf32> to vector<32x128xf32>
    %80 = arith.truncf %79 : vector<32x128xf32> to vector<32x128xbf16>
    %c0_21 = arith.constant 0 : index
    %c0_22 = arith.constant 0 : index
    %81 = vector.load %arg4[%c0_21, %c0_22] : memref<128x128xbf16, #tpu.memory_space<vmem>>, vector<128x128xbf16>
    %cst_23 = arith.constant dense<0.000000e+00> : vector<32x128xf32>
    %82 = tpu.matmul %80, %81, %cst_23 {dimension_numbers = #tpu.dot_dimension_numbers<[1], [0], [0], [1], [0, 0, 1, 1], [], []>} : vector<32x128xbf16>, vector<128x128xbf16>, vector<32x128xf32> -> vector<32x128xf32>
    %83 = vector.broadcast %6 : vector<1x128xf32> to vector<32x128xf32>
    %84 = arith.addf %82, %83 : vector<32x128xf32>
    %85 = arith.addf %38, %84 : vector<32x128xf32>
    %cst_24 = arith.constant dense<0.000000e+00> : vector<32xf32>
    %86 = vector.multi_reduction <add>, %85, %cst_24 [1] : vector<32x128xf32> to vector<32xf32>
    %87 = vector.shape_cast %86 : vector<32xf32> to vector<32x1xf32>
    %cst_25 = arith.constant 1.280000e+02 : f32
    %88 = vector.broadcast %cst_25 : f32 to vector<32x1xf32>
    %89 = arith.divf %87, %88 : vector<32x1xf32>
    %90 = vector.broadcast %89 : vector<32x1xf32> to vector<32x128xf32>
    %91 = arith.subf %85, %90 : vector<32x128xf32>
    %92 = arith.mulf %91, %91 : vector<32x128xf32>
    %cst_26 = arith.constant dense<0.000000e+00> : vector<32xf32>
    %93 = vector.multi_reduction <add>, %92, %cst_26 [1] : vector<32x128xf32> to vector<32xf32>
    %94 = vector.shape_cast %93 : vector<32xf32> to vector<32x1xf32>
    %cst_27 = arith.constant 1.280000e+02 : f32
    %95 = vector.broadcast %cst_27 : f32 to vector<32x1xf32>
    %96 = arith.divf %94, %95 : vector<32x1xf32>
    %97 = vector.broadcast %89 : vector<32x1xf32> to vector<32x128xf32>
    %98 = arith.subf %85, %97 : vector<32x128xf32>
    %cst_28 = arith.constant 9.99999996E-13 : f32
    %99 = vector.broadcast %cst_28 : f32 to vector<32x1xf32>
    %100 = arith.addf %96, %99 : vector<32x1xf32>
    %101 = math.rsqrt %100 : vector<32x1xf32>
    %102 = vector.broadcast %101 : vector<32x1xf32> to vector<32x128xf32>
    %103 = arith.mulf %98, %102 : vector<32x128xf32>
    %104 = vector.broadcast %7 : vector<1x128xf32> to vector<32x128xf32>
    %105 = arith.mulf %103, %104 : vector<32x128xf32>
    %106 = vector.broadcast %8 : vector<1x128xf32> to vector<32x128xf32>
    %107 = arith.addf %105, %106 : vector<32x128xf32>
    %108 = arith.truncf %107 : vector<32x128xf32> to vector<32x128xbf16>
    %c0_29 = arith.constant 0 : index
    %c0_30 = arith.constant 0 : index
    %109 = vector.load %arg5[%c0_29, %c0_30] : memref<128x256xbf16, #tpu.memory_space<vmem>>, vector<128x256xbf16>
    %cst_31 = arith.constant dense<0.000000e+00> : vector<32x256xf32>
    %110 = tpu.matmul %108, %109, %cst_31 {dimension_numbers = #tpu.dot_dimension_numbers<[1], [0], [0], [1], [0, 0, 1, 1], [], []>} : vector<32x128xbf16>, vector<128x256xbf16>, vector<32x256xf32> -> vector<32x256xf32>
    %111 = vector.broadcast %9 : vector<1x256xf32> to vector<32x256xf32>
    %112 = arith.addf %110, %111 : vector<32x256xf32>
    %113 = arith.mulf %112, %112 : vector<32x256xf32>
    %114 = arith.mulf %112, %113 : vector<32x256xf32>
    %cst_32 = arith.constant 4.471500e-02 : f32
    %115 = vector.broadcast %cst_32 : f32 to vector<32x256xf32>
    %116 = arith.mulf %115, %114 : vector<32x256xf32>
    %117 = arith.addf %112, %116 : vector<32x256xf32>
    %cst_33 = arith.constant 0.797884583 : f32
    %118 = vector.broadcast %cst_33 : f32 to vector<32x256xf32>
    %119 = arith.mulf %118, %117 : vector<32x256xf32>
    %120 = math.tanh %119 : vector<32x256xf32>
    %cst_34 = arith.constant 1.000000e+00 : f32
    %121 = vector.broadcast %cst_34 : f32 to vector<32x256xf32>
    %122 = arith.addf %121, %120 : vector<32x256xf32>
    %cst_35 = arith.constant 5.000000e-01 : f32
    %123 = vector.broadcast %cst_35 : f32 to vector<32x256xf32>
    %124 = arith.mulf %123, %122 : vector<32x256xf32>
    %125 = arith.mulf %112, %124 : vector<32x256xf32>
    %126 = arith.truncf %125 : vector<32x256xf32> to vector<32x256xbf16>
    %c0_36 = arith.constant 0 : index
    %c0_37 = arith.constant 0 : index
    %127 = vector.load %arg6[%c0_36, %c0_37] : memref<256x128xbf16, #tpu.memory_space<vmem>>, vector<256x128xbf16>
    %cst_38 = arith.constant dense<0.000000e+00> : vector<32x128xf32>
    %128 = tpu.matmul %126, %127, %cst_38 {dimension_numbers = #tpu.dot_dimension_numbers<[1], [0], [0], [1], [0, 0, 1, 1], [], []>} : vector<32x256xbf16>, vector<256x128xbf16>, vector<32x128xf32> -> vector<32x128xf32>
    %129 = vector.broadcast %10 : vector<1x128xf32> to vector<32x128xf32>
    %130 = arith.addf %128, %129 : vector<32x128xf32>
    %131 = arith.addf %107, %130 : vector<32x128xf32>
    %cst_39 = arith.constant dense<0.000000e+00> : vector<32xf32>
    %132 = vector.multi_reduction <add>, %131, %cst_39 [1] : vector<32x128xf32> to vector<32xf32>
    %133 = vector.shape_cast %132 : vector<32xf32> to vector<32x1xf32>
    %cst_40 = arith.constant 1.280000e+02 : f32
    %134 = vector.broadcast %cst_40 : f32 to vector<32x1xf32>
    %135 = arith.divf %133, %134 : vector<32x1xf32>
    %136 = vector.broadcast %135 : vector<32x1xf32> to vector<32x128xf32>
    %137 = arith.subf %131, %136 : vector<32x128xf32>
    %138 = arith.mulf %137, %137 : vector<32x128xf32>
    %cst_41 = arith.constant dense<0.000000e+00> : vector<32xf32>
    %139 = vector.multi_reduction <add>, %138, %cst_41 [1] : vector<32x128xf32> to vector<32xf32>
    %140 = vector.shape_cast %139 : vector<32xf32> to vector<32x1xf32>
    %cst_42 = arith.constant 1.280000e+02 : f32
    %141 = vector.broadcast %cst_42 : f32 to vector<32x1xf32>
    %142 = arith.divf %140, %141 : vector<32x1xf32>
    %143 = vector.broadcast %135 : vector<32x1xf32> to vector<32x128xf32>
    %144 = arith.subf %131, %143 : vector<32x128xf32>
    %cst_43 = arith.constant 9.99999996E-13 : f32
    %145 = vector.broadcast %cst_43 : f32 to vector<32x1xf32>
    %146 = arith.addf %142, %145 : vector<32x1xf32>
    %147 = math.rsqrt %146 : vector<32x1xf32>
    %148 = vector.broadcast %147 : vector<32x1xf32> to vector<32x128xf32>
    %149 = arith.mulf %144, %148 : vector<32x128xf32>
    %150 = vector.broadcast %11 : vector<1x128xf32> to vector<32x128xf32>
    %151 = arith.mulf %149, %150 : vector<32x128xf32>
    %152 = vector.broadcast %12 : vector<1x128xf32> to vector<32x128xf32>
    %153 = arith.addf %151, %152 : vector<32x128xf32>
    %154 = vector.broadcast %13 : vector<1x128xf32> to vector<32x128xf32>
    %155 = arith.mulf %153, %154 : vector<32x128xf32>
    %cst_44 = arith.constant dense<0.000000e+00> : vector<32xf32>
    %156 = vector.multi_reduction <add>, %155, %cst_44 [1] : vector<32x128xf32> to vector<32xf32>
    %157 = vector.shape_cast %156 : vector<32xf32> to vector<32x1xf32>
    %158 = vector.broadcast %14 : vector<1x1xf32> to vector<32x1xf32>
    %159 = arith.addf %157, %158 : vector<32x1xf32>
    %160 = arith.negf %159 : vector<32x1xf32>
    %161 = math.exp %160 : vector<32x1xf32>
    %cst_45 = arith.constant 1.000000e+00 : f32
    %162 = vector.broadcast %cst_45 : f32 to vector<32x1xf32>
    %163 = arith.addf %162, %161 : vector<32x1xf32>
    %164 = arith.divf %162, %163 : vector<32x1xf32>
    %165 = vector.shape_cast %164 : vector<32x1xf32> to vector<2x16xf32>
    %c0_46 = arith.constant 0 : index
    %c0_47 = arith.constant 0 : index
    %166 = vector.load %arg8[%c0_46, %c0_47] : memref<2x16xf32, #tpu.memory_space<vmem>>, vector<2x16xf32>
    tpu.vector_store %arg8[%c0_46, %c0_47], %165 {strides = array<i32>} : memref<2x16xf32, #tpu.memory_space<vmem>>, vector<2x16xf32>,
    return
  }
  func.func @transform_0(%arg0: i32) -> (i32, i32, i32) {
    %c0_i32 = arith.constant 0 : i32
    %c0_i32_0 = arith.constant 0 : i32
    %c0_i32_1 = arith.constant 0 : i32
    return %arg0, %c0_i32, %c0_i32_0 : i32, i32, i32
  }
  func.func @transform_1(%arg0: i32) -> (i32, i32, i32) {
    %c0_i32 = arith.constant 0 : i32
    %c0_i32_0 = arith.constant 0 : i32
    %c0_i32_1 = arith.constant 0 : i32
    return %arg0, %c0_i32, %c0_i32_0 : i32, i32, i32
  }
  func.func @transform_2(%arg0: i32) -> (i32, i32) {
    %c0_i32 = arith.constant 0 : i32
    %c0_i32_0 = arith.constant 0 : i32
    %c0_i32_1 = arith.constant 0 : i32
    return %c0_i32, %c0_i32_0 : i32, i32
  }
  func.func @transform_3(%arg0: i32) -> (i32, i32) {
    %c0_i32 = arith.constant 0 : i32
    %c0_i32_0 = arith.constant 0 : i32
    %c0_i32_1 = arith.constant 0 : i32
    return %c0_i32, %c0_i32_0 : i32, i32
  }
  func.func @transform_4(%arg0: i32) -> (i32, i32) {
    %c0_i32 = arith.constant 0 : i32
    %c0_i32_0 = arith.constant 0 : i32
    %c0_i32_1 = arith.constant 0 : i32
    return %c0_i32, %c0_i32_0 : i32, i32
  }
  func.func @transform_5(%arg0: i32) -> (i32, i32) {
    %c0_i32 = arith.constant 0 : i32
    %c0_i32_0 = arith.constant 0 : i32
    %c0_i32_1 = arith.constant 0 : i32
    return %c0_i32, %c0_i32_0 : i32, i32
  }
  func.func @transform_6(%arg0: i32) -> (i32, i32) {
    %c0_i32 = arith.constant 0 : i32
    %c0_i32_0 = arith.constant 0 : i32
    %c0_i32_1 = arith.constant 0 : i32
    return %c0_i32, %c0_i32_0 : i32, i32
  }
  func.func @transform_7(%arg0: i32) -> (i32, i32) {
    %c0_i32 = arith.constant 0 : i32
    %c0_i32_0 = arith.constant 0 : i32
    return %arg0, %c0_i32 : i32, i32
  }
}

</mosaic_0001>

<llo_original>
// kernel: tpu_custom_call.1
$region0: #{tpu_custom_call.1}
  #allocation0 [shape = 'u32[]', space=smem, size = 0x4, offset = 0x4, fixed_abs, tag = 'smem constant byte address 0x4 - core index']
  #allocation1 [shape = 'u32[72,128]{1,0:T(1,128)}', space=vmem, size = 0x9000, scoped, tag = 'internal scratch']
  %s0 = inlined_call_operand.hbm [shape: f32[2,16,128], index: 0, kind: input, shape index: {}]
  %s1 = inlined_call_operand.hbm [shape: f32[2,1,16], index: 1, kind: input, shape index: {}]
  %s2 = inlined_call_operand.hbm [shape: bf16[128,384], index: 2, kind: input, shape index: {}]
  %s3 = inlined_call_operand.hbm [shape: bf16[128,128], index: 3, kind: input, shape index: {}]
  %s4 = inlined_call_operand.hbm [shape: bf16[128,256], index: 4, kind: input, shape index: {}]
  %s5 = inlined_call_operand.hbm [shape: bf16[256,128], index: 5, kind: input, shape index: {}]
  %s6 = inlined_call_operand.hbm [shape: f32[14,256], index: 6, kind: input, shape index: {}]
  %s7 = inlined_call_operand.hbm [shape: f32[2,16], index: 7, kind: output, shape index: {}]
  %s8 = sld [smem:[#allocation0]]
  $region66: #{tpu_custom_call.1} parent=0
    _
  %s10 = ssub.s32 1, %s8
  %s11 = scalar_select 0, %s10, %s8
  $region1: #{tpu_custom_call.1} parent=0
    #allocation2 [shape = 'u8[16384]{0}', space=vmem, size = 0x4000, scoped, tag = 'input window, operand 0, single buffered']
    #allocation3 [shape = 's32[1]{0}', space=sflag, size = 0x4, scoped, tag = 'scoped memory for tpu_custom_call.1']
    #allocation4 [shape = 's32[1]{0}', space=sflag, size = 0x4, scoped, tag = 'scoped memory for tpu_custom_call.1']
    #allocation5 [shape = 'u8[1024]{0}', space=vmem, size = 0x400, scoped, tag = 'input window, operand 1, single buffered']
    #allocation6 [shape = 's32[1]{0}', space=sflag, size = 0x4, scoped, tag = 'scoped memory for tpu_custom_call.1']
    #allocation7 [shape = 'u8[98304]{0}', space=vmem, size = 0x18000, scoped, tag = 'input window, operand 2, single buffered']
    #allocation8 [shape = 'u8[32768]{0}', space=vmem, size = 0x8000, scoped, tag = 'input window, operand 3, single buffered']
    #allocation9 [shape = 's32[1]{0}', space=sflag, size = 0x4, scoped, tag = 'scoped memory for tpu_custom_call.1']
    #allocation10 [shape = 'u8[65536]{0}', space=vmem, size = 0x10000, scoped, tag = 'input window, operand 4, single buffered']
    #allocation11 [shape = 'u8[65536]{0}', space=vmem, size = 0x10000, scoped, tag = 'input window, operand 5, single buffered']
    #allocation12 [shape = 's32[1]{0}', space=sflag, size = 0x4, scoped, tag = 'scoped memory for tpu_custom_call.1']
    #allocation13 [shape = 'u8[16384]{0}', space=vmem, size = 0x4000, scoped, tag = 'input window, operand 6, single buffered']
    #allocation14 [shape = 'u8[1024]{0}', space=vmem, size = 0x400, scoped, tag = 'output window, operand 0, single buffered']
    %12 = vsyncpa [#allocation3], 0
    %13 = vsyncpa [#allocation6], 0
    %14 = vsyncpa [#allocation9], 0
    %15 = vsyncpa [#allocation12], 0
    %16 = vsyncpa [#allocation4], 0
    // Predicated region
    $region2: #{tpu_custom_call.1} parent=1 // pred_check
      _
    $region3: #{tpu_custom_call.1} parent=1 // pred_check_branch
      %18 = sbr.rel (0) target = $region5
    $region4: #{tpu_custom_call.1} parent=1 // pred_region
      %20 = vsyncadd [#allocation3], 0
      %s21 = sshll.u32 %s0, 4
      %s22 = int_to_ptr.hbm [resolvable:$true] %s21
      %s23 = sshll.u32 [#allocation2], 4
      %s24 = int_to_ptr.vmem [resolvable:$true] %s23
      %29 = dma.hbm_to_vmem [thread:$0]  %s22, 512, %s24, [#allocation3], 128, 128, 8
    $region5: #{tpu_custom_call.1} parent=1 // pred_fallthru
      _
    // Predicated region
    $region6: #{tpu_custom_call.1} parent=1 // pred_check
      _
    $region7: #{tpu_custom_call.1} parent=1 // pred_check_branch
      %31 = sbr.rel (0) target = $region9
    $region8: #{tpu_custom_call.1} parent=1 // pred_region
      %33 = vsyncadd [#allocation6], 0
      %s34 = sshll.u32 %s1, 4
      %s35 = int_to_ptr.hbm [resolvable:$true] %s34
      %s36 = sshll.u32 [#allocation5], 4
      %s37 = int_to_ptr.vmem [resolvable:$true] %s36
      %42 = dma.hbm_to_vmem [thread:$0]  %s35, 32, %s37, [#allocation6], 16, 16, 1
    $region9: #{tpu_custom_call.1} parent=1 // pred_fallthru
      _
    // Predicated region
    $region10: #{tpu_custom_call.1} parent=1 // pred_check
      _
    $region11: #{tpu_custom_call.1} parent=1 // pred_check_branch
      %44 = sbr.rel (0) target = $region13
    $region12: #{tpu_custom_call.1} parent=1 // pred_region
      %46 = vsyncadd [#allocation6], 0
      %s47 = sshll.u32 %s2, 4
      %s48 = int_to_ptr.hbm [resolvable:$true] %s47
      %s49 = sshll.u32 [#allocation7], 4
      %s50 = int_to_ptr.vmem [resolvable:$true] %s49
      %55 = dma.hbm_to_vmem [thread:$0]  %s48, 3072, %s50, [#allocation6], 192, 192, 12
    $region13: #{tpu_custom_call.1} parent=1 // pred_fallthru
      _
    // Predicated region
    $region14: #{tpu_custom_call.1} parent=1 // pred_check
      _
    $region15: #{tpu_custom_call.1} parent=1 // pred_check_branch
      %57 = sbr.rel (0) target = $region17
    $region16: #{tpu_custom_call.1} parent=1 // pred_region
      %59 = vsyncadd [#allocation9], 0
      %s60 = sshll.u32 %s3, 4
      %s61 = int_to_ptr.hbm [resolvable:$true] %s60
      %s62 = sshll.u32 [#allocation8], 4
      %s63 = int_to_ptr.vmem [resolvable:$true] %s62
      %68 = dma.hbm_to_vmem [thread:$0]  %s61, 1024, %s63, [#allocation9], 64, 64, 4
    $region17: #{tpu_custom_call.1} parent=1 // pred_fallthru
      _
    // Predicated region
    $region18: #{tpu_custom_call.1} parent=1 // pred_check
      _
    $region19: #{tpu_custom_call.1} parent=1 // pred_check_branch
      %70 = sbr.rel (0) target = $region21
    $region20: #{tpu_custom_call.1} parent=1 // pred_region
      %72 = vsyncadd [#allocation9], 0
      %s73 = sshll.u32 %s4, 4
      %s74 = int_to_ptr.hbm [resolvable:$true] %s73
      %s75 = sshll.u32 [#allocation10], 4
      %s76 = int_to_ptr.vmem [resolvable:$true] %s75
      %81 = dma.hbm_to_vmem [thread:$0]  %s74, 2048, %s76, [#allocation9], 128, 128, 8
    $region21: #{tpu_custom_call.1} parent=1 // pred_fallthru
      _
    // Predicated region
    $region22: #{tpu_custom_call.1} parent=1 // pred_check
      _
    $region23: #{tpu_custom_call.1} parent=1 // pred_check_branch
      %83 = sbr.rel (0) target = $region25
    $region24: #{tpu_custom_call.1} parent=1 // pred_region
      %85 = vsyncadd [#allocation12], 0
      %s86 = sshll.u32 %s5, 4
      %s87 = int_to_ptr.hbm [resolvable:$true] %s86
      %s88 = sshll.u32 [#allocation11], 4
      %s89 = int_to_ptr.vmem [resolvable:$true] %s88
      %94 = dma.hbm_to_vmem [thread:$0]  %s87, 2048, %s89, [#allocation12], 64, 64, 4
    $region25: #{tpu_custom_call.1} parent=1 // pred_fallthru
      _
    // Predicated region
    $region26: #{tpu_custom_call.1} parent=1 // pred_check
      _
    $region27: #{tpu_custom_call.1} parent=1 // pred_check_branch
      %96 = sbr.rel (0) target = $region29
    $region28: #{tpu_custom_call.1} parent=1 // pred_region
      %98 = vsyncadd [#allocation12], 0
      %s99 = sshll.u32 %s6, 4
      %s100 = int_to_ptr.hbm [resolvable:$true] %s99
      %s101 = sshll.u32 [#allocation13], 4
      %s102 = int_to_ptr.vmem [resolvable:$true] %s101
      %107 = dma.hbm_to_vmem [thread:$0]  %s100, 512, %s102, [#allocation12], 256, 256, 16
    $region29: #{tpu_custom_call.1} parent=1 // pred_fallthru
      _
    // Predicated region
    $region30: #{tpu_custom_call.1} parent=1 // pred_check
      _
    $region31: #{tpu_custom_call.1} parent=1 // pred_check_branch
      %109 = sbr.rel (0) target = $region33
    $region32: #{tpu_custom_call.1} parent=1 // pred_region
      %111 = dma.done [#allocation3], 512
    $region33: #{tpu_custom_call.1} parent=1 // pred_fallthru
      _
    // Predicated region
    $region34: #{tpu_custom_call.1} parent=1 // pred_check
      _
    $region35: #{tpu_custom_call.1} parent=1 // pred_check_branch
      %113 = sbr.rel (0) target = $region37
    $region36: #{tpu_custom_call.1} parent=1 // pred_region
      %115 = dma.done [#allocation6], 32
    $region37: #{tpu_custom_call.1} parent=1 // pred_fallthru
      _
    // Predicated region
    $region38: #{tpu_custom_call.1} parent=1 // pred_check
      _
    $region39: #{tpu_custom_call.1} parent=1 // pred_check_branch
      %117 = sbr.rel (0) target = $region41
    $region40: #{tpu_custom_call.1} parent=1 // pred_region
      %119 = dma.done [#allocation6], 3072
    $region41: #{tpu_custom_call.1} parent=1 // pred_fallthru
      _
    // Predicated region
    $region42: #{tpu_custom_call.1} parent=1 // pred_check
      _
    $region43: #{tpu_custom_call.1} parent=1 // pred_check_branch
      %121 = sbr.rel (0) target = $region45
    $region44: #{tpu_custom_call.1} parent=1 // pred_region
      %123 = dma.done [#allocation9], 1024
    $region45: #{tpu_custom_call.1} parent=1 // pred_fallthru
      _
    // Predicated region
    $region46: #{tpu_custom_call.1} parent=1 // pred_check
      _
    $region47: #{tpu_custom_call.1} parent=1 // pred_check_branch
      %125 = sbr.rel (0) target = $region49
    $region48: #{tpu_custom_call.1} parent=1 // pred_region
      %127 = dma.done [#allocation9], 2048
    $region49: #{tpu_custom_call.1} parent=1 // pred_fallthru
      _
    // Predicated region
    $region50: #{tpu_custom_call.1} parent=1 // pred_check
      _
    $region51: #{tpu_custom_call.1} parent=1 // pred_check_branch
      %129 = sbr.rel (0) target = $region53
    $region52: #{tpu_custom_call.1} parent=1 // pred_region
      %131 = dma.done [#allocation12], 2048
    $region53: #{tpu_custom_call.1} parent=1 // pred_fallthru
      _
    // Predicated region
    $region54: #{tpu_custom_call.1} parent=1 // pred_check
      _
    $region55: #{tpu_custom_call.1} parent=1 // pred_check_branch
      %133 = sbr.rel (0) target = $region57
    $region56: #{tpu_custom_call.1} parent=1 // pred_region
      %135 = dma.done [#allocation12], 512
    $region57: #{tpu_custom_call.1} parent=1 // pred_fallthru
      _
    %v137 = vld [vmem:[#allocation13] sm:$0xff]
    %v138 = vld [vmem:[#allocation13 + $0x10] sm:$0x3f]
    %v139 = vld [vmem:[#allocation13 + $0x18] sm:$0x3f]
    %v140 = vld [vmem:[#allocation2] sm:$0xff]
    %v141 = vld [vmem:[#allocation2 + $0x8] sm:$0xff]
    %v142 = vld [vmem:[#allocation2 + $0x10] sm:$0xff]
    %v143 = vld [vmem:[#allocation2 + $0x18] sm:$0xff]
    %144 = vadd.xlane.f32.xlu0 %v140
    %v145 = vpop.xlane.xlu0 %144
    %146 = vadd.xlane.f32.xlu0 %v141
    %v147 = vpop.xlane.xlu0 %146
    %148 = vadd.xlane.f32.xlu0 %v142
    %v149 = vpop.xlane.xlu0 %148
    %150 = vadd.xlane.f32.xlu0 %v143
    %v151 = vpop.xlane.xlu0 %150
    %v152 = vrcp.pop 128.0
    %v153 = vmul.f32 128.0, %v152
    %v154 = vsub.f32 1.0, %v153
    %v155 = vmul.f32 %v152, %v154
    %v156 = vadd.f32 %v152, %v155
    %vm157 = vweird.f32 %v152
    %v158 = vsel %vm157, %v152, %v156
    %v159 = vmul.f32 %v145, %v158
    %v160 = vmul.f32 %v147, %v158
    %v161 = vmul.f32 %v149, %v158
    %v162 = vmul.f32 %v151, %v158
    %v163 = vsub.f32 %v140, %v159
    %v164 = vsub.f32 %v141, %v160
    %v165 = vsub.f32 %v142, %v161
    %v166 = vsub.f32 %v143, %v162
    %v167 = vmul.f32 %v163, %v163
    %v168 = vmul.f32 %v164, %v164
    %v169 = vmul.f32 %v165, %v165
    %v170 = vmul.f32 %v166, %v166
    %171 = vadd.xlane.f32.xlu0 %v167
    %v172 = vpop.xlane.xlu0 %171
    %173 = vadd.xlane.f32.xlu0 %v168
    %v174 = vpop.xlane.xlu0 %173
    %175 = vadd.xlane.f32.xlu0 %v169
    %v176 = vpop.xlane.xlu0 %175
    %177 = vadd.xlane.f32.xlu0 %v170
    %v178 = vpop.xlane.xlu0 %177
    %v179 = vmul.f32 %v172, %v158
    %v180 = vmul.f32 %v174, %v158
    %v181 = vmul.f32 %v176, %v158
    %v182 = vmul.f32 %v178, %v158
    %v183 = vadd.f32 %v179, 1e-12
    %v184 = vadd.f32 %v180, 1e-12
    %v185 = vadd.f32 %v181, 1e-12
    %v186 = vadd.f32 %v182, 1e-12
    %v187 = vrsqrt.pop %v183
    %v188 = vmul.f32 %v187, %v183
    %v189 = vmul.f32 %v188, %v187
    %v190 = vmul.f32 0.5, %v189
    %v191 = vsub.f32 1.5, %v190
    %v192 = vmul.f32 %v187, %v191
    %vm193 = vweird.f32 %v183
    %vm194 = vweird.f32 %v187
    %vm195 = vmor %vm193, %vm194
    %v196 = vsel %vm195, %v187, %v192
    %v197 = vrsqrt.pop %v184
    %v198 = vmul.f32 %v197, %v184
    %v199 = vmul.f32 %v198, %v197
    %v200 = vmul.f32 0.5, %v199
    %v201 = vsub.f32 1.5, %v200
    %v202 = vmul.f32 %v197, %v201
    %vm203 = vweird.f32 %v184
    %vm204 = vweird.f32 %v197
    %vm205 = vmor %vm203, %vm204
    %v206 = vsel %vm205, %v197, %v202
    %v207 = vrsqrt.pop %v185
    %v208 = vmul.f32 %v207, %v185
    %v209 = vmul.f32 %v208, %v207
    %v210 = vmul.f32 0.5, %v209
    %v211 = vsub.f32 1.5, %v210
    %v212 = vmul.f32 %v207, %v211
    %vm213 = vweird.f32 %v185
    %vm214 = vweird.f32 %v207
    %vm215 = vmor %vm213, %vm214
    %v216 = vsel %vm215, %v207, %v212
    %v217 = vrsqrt.pop %v186
    %v218 = vmul.f32 %v217, %v186
    %v219 = vmul.f32 %v218, %v217
    %v220 = vmul.f32 0.5, %v219
    %v221 = vsub.f32 1.5, %v220
    %v222 = vmul.f32 %v217, %v221
    %vm223 = vweird.f32 %v186
    %vm224 = vweird.f32 %v217
    %vm225 = vmor %vm223, %vm224
    %v226 = vsel %vm225, %v217, %v222
    %v227 = vmul.f32 %v163, %v196
    %v228 = vmul.f32 %v164, %v206
    %v229 = vmul.f32 %v165, %v216
    %v230 = vmul.f32 %v166, %v226
    %v231 = vperm.slane %v137, 0
    %v232 = vmul.f32 %v227, %v231
    %v233 = vmul.f32 %v228, %v231
    %v234 = vmul.f32 %v229, %v231
    %v235 = vmul.f32 %v230, %v231
    %v236 = vperm.slane %v137, 1
    %v237 = vadd.f32 %v232, %v236
    %v238 = vadd.f32 %v233, %v236
    %v239 = vadd.f32 %v234, %v236
    %v240 = vadd.f32 %v235, %v236
    %v241 = vpack.c.bf16 %v238, %v237
    %v242 = vpack.c.bf16 %v240, %v239
    %v243 = vld [vmem:[#allocation7] sm:$0xff]
    %v244 = vld [vmem:[#allocation7 + $0x8] sm:$0xf]
    %v245 = vld [vmem:[#allocation7 + $0xc] sm:$0xff]
    %v246 = vld [vmem:[#allocation7 + $0x14] sm:$0xf]
    %v247 = vld [vmem:[#allocation7 + $0x18] sm:$0xff]
    %v248 = vld [vmem:[#allocation7 + $0x20] sm:$0xf]
    %v249 = vld [vmem:[#allocation7 + $0x24] sm:$0xff]
    %v250 = vld [vmem:[#allocation7 + $0x2c] sm:$0xf]
    %v251 = vld [vmem:[#allocation7 + $0x30] sm:$0xff]
    %v252 = vld [vmem:[#allocation7 + $0x38] sm:$0xf]
    %v253 = vld [vmem:[#allocation7 + $0x3c] sm:$0xff]
    %v254 = vld [vmem:[#allocation7 + $0x44] sm:$0xf]
    %v255 = vld [vmem:[#allocation7 + $0x48] sm:$0xff]
    %v256 = vld [vmem:[#allocation7 + $0x50] sm:$0xf]
    %v257 = vld [vmem:[#allocation7 + $0x54] sm:$0xff]
    %v258 = vld [vmem:[#allocation7 + $0x5c] sm:$0xf]
    %v259 = vld [vmem:[#allocation7 + $0x60] sm:$0xff]
    %v260 = vld [vmem:[#allocation7 + $0x68] sm:$0xf]
    %v261 = vld [vmem:[#allocation7 + $0x6c] sm:$0xff]
    %v262 = vld [vmem:[#allocation7 + $0x74] sm:$0xf]
    %v263 = vld [vmem:[#allocation7 + $0x78] sm:$0xff]
    %v264 = vld [vmem:[#allocation7 + $0x80] sm:$0xf]
    %v265 = vld [vmem:[#allocation7 + $0x84] sm:$0xff]
    %v266 = vld [vmem:[#allocation7 + $0x8c] sm:$0xf]
    %v267 = vld [vmem:[#allocation7 + $0x90] sm:$0xff]
    %v268 = vld [vmem:[#allocation7 + $0x98] sm:$0xf]
    %v269 = vld [vmem:[#allocation7 + $0x9c] sm:$0xff]
    %v270 = vld [vmem:[#allocation7 + $0xa4] sm:$0xf]
    %v271 = vld [vmem:[#allocation7 + $0xa8] sm:$0xff]
    %v272 = vld [vmem:[#allocation7 + $0xb0] sm:$0xf]
    %v273 = vld [vmem:[#allocation7 + $0xb4] sm:$0xff]
    %v274 = vld [vmem:[#allocation7 + $0xbc] sm:$0xf]
    %v307 = vunpack.c.l.b16 %v243
    %v308 = vunpack.c.h.b16 %v243
    %v309 = vunpack.c.l.b16 %v244
    %v310 = vunpack.c.l.b16 %v245
    %v311 = vunpack.c.h.b16 %v245
    %v312 = vunpack.c.l.b16 %v246
    %v313 = vunpack.c.l.b16 %v247
    %v314 = vunpack.c.h.b16 %v247
    %v315 = vunpack.c.l.b16 %v248
    %v316 = vunpack.c.l.b16 %v249
    %v317 = vunpack.c.h.b16 %v249
    %v318 = vunpack.c.l.b16 %v250
    %v319 = vunpack.c.l.b16 %v251
    %v320 = vunpack.c.h.b16 %v251
    %v321 = vunpack.c.l.b16 %v252
    %v322 = vunpack.c.l.b16 %v253
    %v323 = vunpack.c.h.b16 %v253
    %v324 = vunpack.c.l.b16 %v254
    %v325 = vunpack.c.l.b16 %v255
    %v326 = vunpack.c.h.b16 %v255
    %v327 = vunpack.c.l.b16 %v256
    %v328 = vunpack.c.l.b16 %v257
    %v329 = vunpack.c.h.b16 %v257
    %v330 = vunpack.c.l.b16 %v258
    %v331 = vunpack.c.l.b16 %v259
    %v332 = vunpack.c.h.b16 %v259
    %v333 = vunpack.c.l.b16 %v260
    %v334 = vunpack.c.l.b16 %v261
    %v335 = vunpack.c.h.b16 %v261
    %v336 = vunpack.c.l.b16 %v262
    %v337 = vunpack.c.l.b16 %v263
    %v338 = vunpack.c.h.b16 %v263
    %v339 = vunpack.c.l.b16 %v264
    %v340 = vunpack.c.l.b16 %v265
    %v341 = vunpack.c.h.b16 %v265
    %v342 = vunpack.c.l.b16 %v266
    %v343 = vunpack.c.l.b16 %v267
    %v344 = vunpack.c.h.b16 %v267
    %v345 = vunpack.c.l.b16 %v268
    %v346 = vunpack.c.l.b16 %v269
    %v347 = vunpack.c.h.b16 %v269
    %v348 = vunpack.c.l.b16 %v270
    %v349 = vunpack.c.l.b16 %v271
    %v350 = vunpack.c.h.b16 %v271
    %v351 = vunpack.c.l.b16 %v272
    %v352 = vunpack.c.l.b16 %v273
    %v353 = vunpack.c.h.b16 %v273
    %v354 = vunpack.c.l.b16 %v274
    %v355 = vpack.c.b16 %v310, %v307
    %v356 = vpack.c.b16 %v311, %v308
    %v357 = vpack.c.b16 %v312, %v309
    %v358 = vpack.c.b16 %v316, %v313
    %v359 = vpack.c.b16 %v317, %v314
    %v360 = vpack.c.b16 %v318, %v315
    %v361 = vpack.c.b16 %v322, %v319
    %v362 = vpack.c.b16 %v323, %v320
    %v363 = vpack.c.b16 %v324, %v321
    %v364 = vpack.c.b16 %v328, %v325
    %v365 = vpack.c.b16 %v329, %v326
    %v366 = vpack.c.b16 %v330, %v327
    %v367 = vpack.c.b16 %v334, %v331
    %v368 = vpack.c.b16 %v335, %v332
    %v369 = vpack.c.b16 %v336, %v333
    %v370 = vpack.c.b16 %v340, %v337
    %v371 = vpack.c.b16 %v341, %v338
    %v372 = vpack.c.b16 %v342, %v339
    %v373 = vpack.c.b16 %v346, %v343
    %v374 = vpack.c.b16 %v347, %v344
    %v375 = vpack.c.b16 %v348, %v345
    %v376 = vpack.c.b16 %v352, %v349
    %v377 = vpack.c.b16 %v353, %v350
    %v378 = vpack.c.b16 %v354, %v351
    %403 = vmatpush.bf16.msra.mxu0 %v376
    %404 = vmatpush.bf16.msra.mxu0 %v373
    %405 = vmatpush.bf16.msra.mxu0 %v370
    %406 = vmatpush.bf16.msra.mxu0 %v367
    %407 = vmatpush.bf16.msra.mxu0 %v364
    %408 = vmatpush.bf16.msra.mxu0 %v361
    %409 = vmatpush.bf16.msra.mxu0 %v358
    %410 = vmatpush.bf16.msra.mxu0 %v355
    %411 = vmatmul.bf16.gmra.mxu0 %v241
    %v412 = vpop.f32.mrf.mxu0
    %v413 = vadd.f32 0.0, %v412
    %v414 = vpop.f32.mrf.mxu0
    %v415 = vadd.f32 0.0, %v414
    %416 = vmatmul.bf16.gmra.mxu0 %v242
    %v417 = vpop.f32.mrf.mxu0
    %v418 = vadd.f32 0.0, %v417
    %v419 = vpop.f32.mrf.mxu0
    %v420 = vadd.f32 0.0, %v419
    %421 = vdwg.mxu0
    %422 = vmatpush.bf16.msra.mxu0 %v377
    %423 = vmatpush.bf16.msra.mxu0 %v374
    %424 = vmatpush.bf16.msra.mxu0 %v371
    %425 = vmatpush.bf16.msra.mxu0 %v368
    %426 = vmatpush.bf16.msra.mxu0 %v365
    %427 = vmatpush.bf16.msra.mxu0 %v362
    %428 = vmatpush.bf16.msra.mxu0 %v359
    %429 = vmatpush.bf16.msra.mxu0 %v356
    %430 = vmatmul.bf16.gmra.mxu0 %v241
    %v431 = vpop.f32.mrf.mxu0
    %v432 = vadd.f32 0.0, %v431
    %v433 = vpop.f32.mrf.mxu0
    %v434 = vadd.f32 0.0, %v433
    %435 = vmatmul.bf16.gmra.mxu0 %v242
    %v436 = vpop.f32.mrf.mxu0
    %v437 = vadd.f32 0.0, %v436
    %v438 = vpop.f32.mrf.mxu0
    %v439 = vadd.f32 0.0, %v438
    %440 = vdwg.mxu0
    %441 = vmatpush.bf16.msra.mxu0 %v378
    %442 = vmatpush.bf16.msra.mxu0 %v375
    %443 = vmatpush.bf16.msra.mxu0 %v372
    %444 = vmatpush.bf16.msra.mxu0 %v369
    %445 = vmatpush.bf16.msra.mxu0 %v366
    %446 = vmatpush.bf16.msra.mxu0 %v363
    %447 = vmatpush.bf16.msra.mxu0 %v360
    %448 = vmatpush.bf16.msra.mxu0 %v357
    %449 = vmatmul.bf16.gmra.mxu0 %v241
    %v450 = vpop.f32.mrf.mxu0
    %v451 = vadd.f32 0.0, %v450
    %v452 = vpop.f32.mrf.mxu0
    %v453 = vadd.f32 0.0, %v452
    %454 = vmatmul.bf16.gmra.mxu0 %v242
    %v455 = vpop.f32.mrf.mxu0
    %v456 = vadd.f32 0.0, %v455
    %v457 = vpop.f32.mrf.mxu0
    %v458 = vadd.f32 0.0, %v457
    %459 = vdwg.mxu0
    %v460 = vperm.slane %v137, 2
    %v461 = vadd.f32 %v413, %v460
    %v462 = vadd.f32 %v415, %v460
    %v463 = vadd.f32 %v418, %v460
    %v464 = vadd.f32 %v420, %v460
    %v465 = vperm.slane %v137, 3
    %v466 = vadd.f32 %v432, %v465
    %v467 = vadd.f32 %v434, %v465
    %v468 = vadd.f32 %v437, %v465
    %v469 = vadd.f32 %v439, %v465
    %v470 = vperm.slane %v137, 4
    %v471 = vadd.f32 %v451, %v470
    %v472 = vadd.f32 %v453, %v470
    %v473 = vadd.f32 %v456, %v470
    %v474 = vadd.f32 %v458, %v470
    %v475 = vpack.c.bf16 %v461, %v461
    %v476 = vpack.c.bf16 %v462, %v462
    %v477 = vpack.c.bf16 %v463, %v463
    %v478 = vpack.c.bf16 %v464, %v464
    %v479 = vpack.c.bf16 %v466, %v466
    %v480 = vpack.c.bf16 %v467, %v467
    %v481 = vpack.c.bf16 %v468, %v468
    %v482 = vpack.c.bf16 %v469, %v469
    %v483 = vpack.c.bf16 %v471, %v471
    %v484 = vpack.c.bf16 %v472, %v472
    %v485 = vpack.c.bf16 %v473, %v473
    %v486 = vpack.c.bf16 %v474, %v474
    %v489 = vunpack.c.l.b16 %v475
    %v490 = vunpack.c.l.b16 %v476
    %v491 = vpack.c.b16 %v490, %v489
    %v495 = vunpack.c.l.b16 %v479
    %v496 = vunpack.c.l.b16 %v480
    %v497 = vpack.c.b16 %v496, %v495
    %499 = vmatpush.bf16.xpose.msra.mxu0 0
    %500 = vmatpush.bf16.xpose.msra.mxu0 0
    %501 = vmatpush.bf16.xpose.msra.mxu0 0
    %502 = vmatpush.bf16.xpose.msra.mxu0 0
    %503 = vmatpush.bf16.xpose.msra.mxu0 0
    %504 = vmatpush.bf16.xpose.msra.mxu0 0
    %505 = vmatpush.bf16.xpose.msra.mxu0 0
    %506 = vmatpush.bf16.xpose.msra.mxu0 %v497
    %507 = vmatmul.bf16.gmra.mxu0 %v491
    %v508 = vpop.f32.mrf.mxu0
    %v509 = vadd.f32 0.0, %v508
    %v510 = vpop.f32.mrf.mxu0
    %v511 = vadd.f32 0.0, %v510
    %512 = vdwg.mxu0
    %v515 = vunpack.c.l.b16 %v477
    %v516 = vunpack.c.l.b16 %v478
    %v517 = vpack.c.b16 %v516, %v515
    %v521 = vunpack.c.l.b16 %v481
    %v522 = vunpack.c.l.b16 %v482
    %v523 = vpack.c.b16 %v522, %v521
    %525 = vmatpush.bf16.xpose.msra.mxu0 0
    %526 = vmatpush.bf16.xpose.msra.mxu0 0
    %527 = vmatpush.bf16.xpose.msra.mxu0 0
    %528 = vmatpush.bf16.xpose.msra.mxu0 0
    %529 = vmatpush.bf16.xpose.msra.mxu0 0
    %530 = vmatpush.bf16.xpose.msra.mxu0 0
    %531 = vmatpush.bf16.xpose.msra.mxu0 0
    %532 = vmatpush.bf16.xpose.msra.mxu0 %v523
    %533 = vmatmul.bf16.gmra.mxu0 %v517
    %v534 = vpop.f32.mrf.mxu0
    %v535 = vadd.f32 0.0, %v534
    %v536 = vpop.f32.mrf.mxu0
    %v537 = vadd.f32 0.0, %v536
    %538 = vdwg.mxu0
    %v539 = vmul.f32 %v509, 0.088388346
    %v540 = vmul.f32 %v511, 0.088388346
    %v541 = vmul.f32 %v535, 0.088388346
    %v542 = vmul.f32 %v537, 0.088388346
    %v543 = vld [vmem:[#allocation5] sm:$0x1]
    %v544 = vld [vmem:[#allocation5 + $0x1] sm:$0x1]
    %v545 = vsub.f32 1.0, %v543
    %v546 = vsub.f32 1.0, %v544
    %v547 = vmul.f32 %v545, -1e+09
    %v548 = vmul.f32 %v546, -1e+09
    %v551 = vperm.slane %v547, 0
    %v552 = vperm.slane %v548, 0
    %v555 = vadd.f32 %v539, %v551
    %v556 = vadd.f32 %v540, %v551
    %v557 = vadd.f32 %v541, %v552
    %v558 = vadd.f32 %v542, %v552
    %vm559 = vcmask 130048
    %v560 = vsel %vm559, %v555, -inf
    %561 = vmax.xlane.f32.xlu0 %v560
    %v562 = vpop.xlane.xlu0 %561
    %v563 = vsel %vm559, %v556, -inf
    %564 = vmax.xlane.f32.xlu0 %v563
    %v565 = vpop.xlane.xlu0 %564
    %v566 = vsel %vm559, %v557, -inf
    %567 = vmax.xlane.f32.xlu0 %v566
    %v568 = vpop.xlane.xlu0 %567
    %v569 = vsel %vm559, %v558, -inf
    %570 = vmax.xlane.f32.xlu0 %v569
    %v571 = vpop.xlane.xlu0 %570
    %v572 = vsub.f32 %v555, %v562
    %v573 = vsub.f32 %v556, %v565
    %v574 = vsub.f32 %v557, %v568
    %v575 = vsub.f32 %v558, %v571
    %v576 = vmul.f32 %v572, 1.442695
    %v577 = vpow.pop %v576
    %v578 = vmul.f32 %v573, 1.442695
    %v579 = vpow.pop %v578
    %v580 = vmul.f32 %v574, 1.442695
    %v581 = vpow.pop %v580
    %v582 = vmul.f32 %v575, 1.442695
    %v583 = vpow.pop %v582
    %v584 = vsel %vm559, %v577, 0.0
    %585 = vadd.xlane.f32.xlu0 %v584
    %v586 = vpop.xlane.xlu0 %585
    %v587 = vsel %vm559, %v579, 0.0
    %588 = vadd.xlane.f32.xlu0 %v587
    %v589 = vpop.xlane.xlu0 %588
    %v590 = vsel %vm559, %v581, 0.0
    %591 = vadd.xlane.f32.xlu0 %v590
    %v592 = vpop.xlane.xlu0 %591
    %v593 = vsel %vm559, %v583, 0.0
    %594 = vadd.xlane.f32.xlu0 %v593
    %v595 = vpop.xlane.xlu0 %594
    %v596 = vrcp.pop %v586
    %v597 = vrcp.pop %v589
    %v598 = vrcp.pop %v592
    %v599 = vrcp.pop %v595
    %v600 = vmul.f32 %v577, %v596
    %v601 = vmul.f32 %v579, %v597
    %v602 = vmul.f32 %v581, %v598
    %v603 = vmul.f32 %v583, %v599
    %v604 = vpack.c.bf16 %v600, %v600
    %v605 = vpack.c.bf16 %v601, %v601
    %v606 = vpack.c.bf16 %v602, %v602
    %v607 = vpack.c.bf16 %v603, %v603
    %v610 = vunpack.c.l.b16 %v604
    %v611 = vunpack.c.l.b16 %v605
    %v612 = vpack.c.b16 %v611, %v610
    %v615 = vunpack.c.l.b16 %v483
    %v616 = vunpack.c.l.b16 %v484
    %v617 = vpack.c.b16 %v616, %v615
    %v620 = vsel %vm559, %v612, 0
    %622 = vmatpush.bf16.msra.mxu0 0
    %623 = vmatpush.bf16.msra.mxu0 0
    %624 = vmatpush.bf16.msra.mxu0 0
    %625 = vmatpush.bf16.msra.mxu0 0
    %626 = vmatpush.bf16.msra.mxu0 0
    %627 = vmatpush.bf16.msra.mxu0 0
    %628 = vmatpush.bf16.msra.mxu0 0
    %629 = vmatpush.bf16.msra.mxu0 %v617
    %630 = vmatmul.bf16.gmra.mxu0 %v620
    %v631 = vpop.f32.mrf.mxu0
    %v632 = vadd.f32 0.0, %v631
    %v633 = vpop.f32.mrf.mxu0
    %v634 = vadd.f32 0.0, %v633
    %635 = vdwg.mxu0
    %v638 = vunpack.c.l.b16 %v606
    %v639 = vunpack.c.l.b16 %v607
    %v640 = vpack.c.b16 %v639, %v638
    %v643 = vunpack.c.l.b16 %v485
    %v644 = vunpack.c.l.b16 %v486
    %v645 = vpack.c.b16 %v644, %v643
    %v648 = vsel %vm559, %v640, 0
    %650 = vmatpush.bf16.msra.mxu0 0
    %651 = vmatpush.bf16.msra.mxu0 0
    %652 = vmatpush.bf16.msra.mxu0 0
    %653 = vmatpush.bf16.msra.mxu0 0
    %654 = vmatpush.bf16.msra.mxu0 0
    %655 = vmatpush.bf16.msra.mxu0 0
    %656 = vmatpush.bf16.msra.mxu0 0
    %657 = vmatpush.bf16.msra.mxu0 %v645
    %658 = vmatmul.bf16.gmra.mxu0 %v648
    %v659 = vpop.f32.mrf.mxu0
    %v660 = vadd.f32 0.0, %v659
    %v661 = vpop.f32.mrf.mxu0
    %v662 = vadd.f32 0.0, %v661
    %663 = vdwg.mxu0
    %v664 = vpack.c.bf16 %v634, %v632
    %v665 = vpack.c.bf16 %v662, %v660
    %v666 = vld [vmem:[#allocation8] sm:$0xf]
    %v667 = vld [vmem:[#allocation8 + $0x4] sm:$0xf]
    %v668 = vld [vmem:[#allocation8 + $0x8] sm:$0xf]
    %v669 = vld [vmem:[#allocation8 + $0xc] sm:$0xf]
    %v670 = vld [vmem:[#allocation8 + $0x10] sm:$0xf]
    %v671 = vld [vmem:[#allocation8 + $0x14] sm:$0xf]
    %v672 = vld [vmem:[#allocation8 + $0x18] sm:$0xf]
    %v673 = vld [vmem:[#allocation8 + $0x1c] sm:$0xf]
    %v674 = vld [vmem:[#allocation8 + $0x20] sm:$0xf]
    %v675 = vld [vmem:[#allocation8 + $0x24] sm:$0xf]
    %v676 = vld [vmem:[#allocation8 + $0x28] sm:$0xf]
    %v677 = vld [vmem:[#allocation8 + $0x2c] sm:$0xf]
    %v678 = vld [vmem:[#allocation8 + $0x30] sm:$0xf]
    %v679 = vld [vmem:[#allocation8 + $0x34] sm:$0xf]
    %v680 = vld [vmem:[#allocation8 + $0x38] sm:$0xf]
    %v681 = vld [vmem:[#allocation8 + $0x3c] sm:$0xf]
    %v682 = vperm.slane %v137, 5
    %v699 = vunpack.c.l.b16 %v666
    %v700 = vunpack.c.l.b16 %v667
    %v701 = vunpack.c.l.b16 %v668
    %v702 = vunpack.c.l.b16 %v669
    %v703 = vunpack.c.l.b16 %v670
    %v704 = vunpack.c.l.b16 %v671
    %v705 = vunpack.c.l.b16 %v672
    %v706 = vunpack.c.l.b16 %v673
    %v707 = vunpack.c.l.b16 %v674
    %v708 = vunpack.c.l.b16 %v675
    %v709 = vunpack.c.l.b16 %v676
    %v710 = vunpack.c.l.b16 %v677
    %v711 = vunpack.c.l.b16 %v678
    %v712 = vunpack.c.l.b16 %v679
    %v713 = vunpack.c.l.b16 %v680
    %v714 = vunpack.c.l.b16 %v681
    %v715 = vpack.c.b16 %v700, %v699
    %v716 = vpack.c.b16 %v702, %v701
    %v717 = vpack.c.b16 %v704, %v703
    %v718 = vpack.c.b16 %v706, %v705
    %v719 = vpack.c.b16 %v708, %v707
    %v720 = vpack.c.b16 %v710, %v709
    %v721 = vpack.c.b16 %v712, %v711
    %v722 = vpack.c.b16 %v714, %v713
    %731 = vmatpush.bf16.msra.mxu0 %v722
    %732 = vmatpush.bf16.msra.mxu0 %v721
    %733 = vmatpush.bf16.msra.mxu0 %v720
    %734 = vmatpush.bf16.msra.mxu0 %v719
    %735 = vmatpush.bf16.msra.mxu0 %v718
    %736 = vmatpush.bf16.msra.mxu0 %v717
    %737 = vmatpush.bf16.msra.mxu0 %v716
    %738 = vmatpush.bf16.msra.mxu0 %v715
    %739 = vmatmul.bf16.gmra.mxu0 %v664
    %v740 = vpop.f32.mrf.mxu0
    %v741 = vadd.f32 %v682, %v740
    %v742 = vpop.f32.mrf.mxu0
    %v743 = vadd.f32 %v682, %v742
    %744 = vmatmul.bf16.gmra.mxu0 %v665
    %v745 = vpop.f32.mrf.mxu0
    %v746 = vadd.f32 %v682, %v745
    %v747 = vpop.f32.mrf.mxu0
    %v748 = vadd.f32 %v682, %v747
    %749 = vdwg.mxu0
    %v750 = vadd.f32 %v237, %v741
    %v751 = vadd.f32 %v238, %v743
    %v752 = vadd.f32 %v239, %v746
    %v753 = vadd.f32 %v240, %v748
    %754 = vadd.xlane.f32.xlu0 %v750
    %v755 = vpop.xlane.xlu0 %754
    %756 = vadd.xlane.f32.xlu0 %v751
    %v757 = vpop.xlane.xlu0 %756
    %758 = vadd.xlane.f32.xlu0 %v752
    %v759 = vpop.xlane.xlu0 %758
    %760 = vadd.xlane.f32.xlu0 %v753
    %v761 = vpop.xlane.xlu0 %760
    %v762 = vmul.f32 %v755, %v158
    %v763 = vmul.f32 %v757, %v158
    %v764 = vmul.f32 %v759, %v158
    %v765 = vmul.f32 %v761, %v158
    %v766 = vsub.f32 %v750, %v762
    %v767 = vsub.f32 %v751, %v763
    %v768 = vsub.f32 %v752, %v764
    %v769 = vsub.f32 %v753, %v765
    %v770 = vmul.f32 %v766, %v766
    %v771 = vmul.f32 %v767, %v767
    %v772 = vmul.f32 %v768, %v768
    %v773 = vmul.f32 %v769, %v769
    %774 = vadd.xlane.f32.xlu0 %v770
    %v775 = vpop.xlane.xlu0 %774
    %776 = vadd.xlane.f32.xlu0 %v771
    %v777 = vpop.xlane.xlu0 %776
    %778 = vadd.xlane.f32.xlu0 %v772
    %v779 = vpop.xlane.xlu0 %778
    %780 = vadd.xlane.f32.xlu0 %v773
    %v781 = vpop.xlane.xlu0 %780
    %v782 = vmul.f32 %v775, %v158
    %v783 = vmul.f32 %v777, %v158
    %v784 = vmul.f32 %v779, %v158
    %v785 = vmul.f32 %v781, %v158
    %v786 = vadd.f32 %v782, 1e-12
    %v787 = vadd.f32 %v783, 1e-12
    %v788 = vadd.f32 %v784, 1e-12
    %v789 = vadd.f32 %v785, 1e-12
    %v790 = vrsqrt.pop %v786
    %v791 = vmul.f32 %v790, %v786
    %v792 = vmul.f32 %v791, %v790
    %v793 = vmul.f32 0.5, %v792
    %v794 = vsub.f32 1.5, %v793
    %v795 = vmul.f32 %v790, %v794
    %vm796 = vweird.f32 %v786
    %vm797 = vweird.f32 %v790
    %vm798 = vmor %vm796, %vm797
    %v799 = vsel %vm798, %v790, %v795
    %v800 = vrsqrt.pop %v787
    %v801 = vmul.f32 %v800, %v787
    %v802 = vmul.f32 %v801, %v800
    %v803 = vmul.f32 0.5, %v802
    %v804 = vsub.f32 1.5, %v803
    %v805 = vmul.f32 %v800, %v804
    %vm806 = vweird.f32 %v787
    %vm807 = vweird.f32 %v800
    %vm808 = vmor %vm806, %vm807
    %v809 = vsel %vm808, %v800, %v805
    %v810 = vrsqrt.pop %v788
    %v811 = vmul.f32 %v810, %v788
    %v812 = vmul.f32 %v811, %v810
    %v813 = vmul.f32 0.5, %v812
    %v814 = vsub.f32 1.5, %v813
    %v815 = vmul.f32 %v810, %v814
    %vm816 = vweird.f32 %v788
    %vm817 = vweird.f32 %v810
    %vm818 = vmor %vm816, %vm817
    %v819 = vsel %vm818, %v810, %v815
    %v820 = vrsqrt.pop %v789
    %v821 = vmul.f32 %v820, %v789
    %v822 = vmul.f32 %v821, %v820
    %v823 = vmul.f32 0.5, %v822
    %v824 = vsub.f32 1.5, %v823
    %v825 = vmul.f32 %v820, %v824
    %vm826 = vweird.f32 %v789
    %vm827 = vweird.f32 %v820
    %vm828 = vmor %vm826, %vm827
    %v829 = vsel %vm828, %v820, %v825
    %v830 = vmul.f32 %v766, %v799
    %v831 = vmul.f32 %v767, %v809
    %v832 = vmul.f32 %v768, %v819
    %v833 = vmul.f32 %v769, %v829
    %v834 = vperm.slane %v137, 6
    %v835 = vmul.f32 %v830, %v834
    %v836 = vmul.f32 %v831, %v834
    %v837 = vmul.f32 %v832, %v834
    %v838 = vmul.f32 %v833, %v834
    %v839 = vperm.slane %v137, 7
    %v840 = vadd.f32 %v835, %v839
    %v841 = vadd.f32 %v836, %v839
    %v842 = vadd.f32 %v837, %v839
    %v843 = vadd.f32 %v838, %v839
    %v844 = vpack.c.bf16 %v841, %v840
    %v845 = vpack.c.bf16 %v843, %v842
    %v846 = vld [vmem:[#allocation10] sm:$0xff]
    %v847 = vld [vmem:[#allocation10 + $0x8] sm:$0xff]
    %v848 = vld [vmem:[#allocation10 + $0x10] sm:$0xff]
    %v849 = vld [vmem:[#allocation10 + $0x18] sm:$0xff]
    %v850 = vld [vmem:[#allocation10 + $0x20] sm:$0xff]
    %v851 = vld [vmem:[#allocation10 + $0x28] sm:$0xff]
    %v852 = vld [vmem:[#allocation10 + $0x30] sm:$0xff]
    %v853 = vld [vmem:[#allocation10 + $0x38] sm:$0xff]
    %v854 = vld [vmem:[#allocation10 + $0x40] sm:$0xff]
    %v855 = vld [vmem:[#allocation10 + $0x48] sm:$0xff]
    %v856 = vld [vmem:[#allocation10 + $0x50] sm:$0xff]
    %v857 = vld [vmem:[#allocation10 + $0x58] sm:$0xff]
    %v858 = vld [vmem:[#allocation10 + $0x60] sm:$0xff]
    %v859 = vld [vmem:[#allocation10 + $0x68] sm:$0xff]
    %v860 = vld [vmem:[#allocation10 + $0x70] sm:$0xff]
    %v861 = vld [vmem:[#allocation10 + $0x78] sm:$0xff]
    %v862 = vperm.slane %v138, 0
    %v863 = vperm.slane %v139, 0
    %v880 = vunpack.c.l.b16 %v846
    %v881 = vunpack.c.h.b16 %v846
    %v882 = vunpack.c.l.b16 %v847
    %v883 = vunpack.c.h.b16 %v847
    %v884 = vunpack.c.l.b16 %v848
    %v885 = vunpack.c.h.b16 %v848
    %v886 = vunpack.c.l.b16 %v849
    %v887 = vunpack.c.h.b16 %v849
    %v888 = vunpack.c.l.b16 %v850
    %v889 = vunpack.c.h.b16 %v850
    %v890 = vunpack.c.l.b16 %v851
    %v891 = vunpack.c.h.b16 %v851
    %v892 = vunpack.c.l.b16 %v852
    %v893 = vunpack.c.h.b16 %v852
    %v894 = vunpack.c.l.b16 %v853
    %v895 = vunpack.c.h.b16 %v853
    %v896 = vunpack.c.l.b16 %v854
    %v897 = vunpack.c.h.b16 %v854
    %v898 = vunpack.c.l.b16 %v855
    %v899 = vunpack.c.h.b16 %v855
    %v900 = vunpack.c.l.b16 %v856
    %v901 = vunpack.c.h.b16 %v856
    %v902 = vunpack.c.l.b16 %v857
    %v903 = vunpack.c.h.b16 %v857
    %v904 = vunpack.c.l.b16 %v858
    %v905 = vunpack.c.h.b16 %v858
    %v906 = vunpack.c.l.b16 %v859
    %v907 = vunpack.c.h.b16 %v859
    %v908 = vunpack.c.l.b16 %v860
    %v909 = vunpack.c.h.b16 %v860
    %v910 = vunpack.c.l.b16 %v861
    %v911 = vunpack.c.h.b16 %v861
    %v912 = vpack.c.b16 %v882, %v880
    %v913 = vpack.c.b16 %v883, %v881
    %v914 = vpack.c.b16 %v886, %v884
    %v915 = vpack.c.b16 %v887, %v885
    %v916 = vpack.c.b16 %v890, %v888
    %v917 = vpack.c.b16 %v891, %v889
    %v918 = vpack.c.b16 %v894, %v892
    %v919 = vpack.c.b16 %v895, %v893
    %v920 = vpack.c.b16 %v898, %v896
    %v921 = vpack.c.b16 %v899, %v897
    %v922 = vpack.c.b16 %v902, %v900
    %v923 = vpack.c.b16 %v903, %v901
    %v924 = vpack.c.b16 %v906, %v904
    %v925 = vpack.c.b16 %v907, %v905
    %v926 = vpack.c.b16 %v910, %v908
    %v927 = vpack.c.b16 %v911, %v909
    %944 = vmatpush.bf16.msra.mxu0 %v926
    %945 = vmatpush.bf16.msra.mxu0 %v924
    %946 = vmatpush.bf16.msra.mxu0 %v922
    %947 = vmatpush.bf16.msra.mxu0 %v920
    %948 = vmatpush.bf16.msra.mxu0 %v918
    %949 = vmatpush.bf16.msra.mxu0 %v916
    %950 = vmatpush.bf16.msra.mxu0 %v914
    %951 = vmatpush.bf16.msra.mxu0 %v912
    %952 = vmatmul.bf16.gmra.mxu0 %v844
    %v953 = vpop.f32.mrf.mxu0
    %v954 = vadd.f32 %v862, %v953
    %v955 = vpop.f32.mrf.mxu0
    %v956 = vadd.f32 %v862, %v955
    %957 = vmatmul.bf16.gmra.mxu0 %v845
    %v958 = vpop.f32.mrf.mxu0
    %v959 = vadd.f32 %v862, %v958
    %v960 = vpop.f32.mrf.mxu0
    %v961 = vadd.f32 %v862, %v960
    %962 = vdwg.mxu0
    %963 = vmatpush.bf16.msra.mxu0 %v927
    %964 = vmatpush.bf16.msra.mxu0 %v925
    %965 = vmatpush.bf16.msra.mxu0 %v923
    %966 = vmatpush.bf16.msra.mxu0 %v921
    %967 = vmatpush.bf16.msra.mxu0 %v919
    %968 = vmatpush.bf16.msra.mxu0 %v917
    %969 = vmatpush.bf16.msra.mxu0 %v915
    %970 = vmatpush.bf16.msra.mxu0 %v913
    %971 = vmatmul.bf16.gmra.mxu0 %v844
    %v972 = vpop.f32.mrf.mxu0
    %v973 = vadd.f32 %v863, %v972
    %v974 = vpop.f32.mrf.mxu0
    %v975 = vadd.f32 %v863, %v974
    %976 = vmatmul.bf16.gmra.mxu0 %v845
    %v977 = vpop.f32.mrf.mxu0
    %v978 = vadd.f32 %v863, %v977
    %v979 = vpop.f32.mrf.mxu0
    %v980 = vadd.f32 %v863, %v979
    %981 = vdwg.mxu0
    %v982 = vmul.f32 %v954, %v954
    %v983 = vmul.f32 %v973, %v973
    %v984 = vmul.f32 %v956, %v956
    %v985 = vmul.f32 %v975, %v975
    %v986 = vmul.f32 %v959, %v959
    %v987 = vmul.f32 %v978, %v978
    %v988 = vmul.f32 %v961, %v961
    %v989 = vmul.f32 %v980, %v980
    %v990 = vmul.f32 %v954, %v982
    %v991 = vmul.f32 %v973, %v983
    %v992 = vmul.f32 %v956, %v984
    %v993 = vmul.f32 %v975, %v985
    %v994 = vmul.f32 %v959, %v986
    %v995 = vmul.f32 %v978, %v987
    %v996 = vmul.f32 %v961, %v988
    %v997 = vmul.f32 %v980, %v989
    %v998 = vmul.f32 %v990, 0.044715
    %v999 = vmul.f32 %v991, 0.044715
    %v1000 = vmul.f32 %v992, 0.044715
    %v1001 = vmul.f32 %v993, 0.044715
    %v1002 = vmul.f32 %v994, 0.044715
    %v1003 = vmul.f32 %v995, 0.044715
    %v1004 = vmul.f32 %v996, 0.044715
    %v1005 = vmul.f32 %v997, 0.044715
    %v1006 = vadd.f32 %v954, %v998
    %v1007 = vadd.f32 %v973, %v999
    %v1008 = vadd.f32 %v956, %v1000
    %v1009 = vadd.f32 %v975, %v1001
    %v1010 = vadd.f32 %v959, %v1002
    %v1011 = vadd.f32 %v978, %v1003
    %v1012 = vadd.f32 %v961, %v1004
    %v1013 = vadd.f32 %v980, %v1005
    %v1014 = vmul.f32 %v1006, 0.7978846
    %v1015 = vmul.f32 %v1007, 0.7978846
    %v1016 = vmul.f32 %v1008, 0.7978846
    %v1017 = vmul.f32 %v1009, 0.7978846
    %v1018 = vmul.f32 %v1010, 0.7978846
    %v1019 = vmul.f32 %v1011, 0.7978846
    %v1020 = vmul.f32 %v1012, 0.7978846
    %v1021 = vmul.f32 %v1013, 0.7978846
    %v1022 = vtanh.pop %v1014
    %v1023 = vtanh.pop %v1015
    %v1024 = vtanh.pop %v1016
    %v1025 = vtanh.pop %v1017
    %v1026 = vtanh.pop %v1018
    %v1027 = vtanh.pop %v1019
    %v1028 = vtanh.pop %v1020
    %v1029 = vtanh.pop %v1021
    %v1030 = vadd.f32 %v1022, 1.0
    %v1031 = vadd.f32 %v1023, 1.0
    %v1032 = vadd.f32 %v1024, 1.0
    %v1033 = vadd.f32 %v1025, 1.0
    %v1034 = vadd.f32 %v1026, 1.0
    %v1035 = vadd.f32 %v1027, 1.0
    %v1036 = vadd.f32 %v1028, 1.0
    %v1037 = vadd.f32 %v1029, 1.0
    %v1038 = vmul.f32 %v1030, 0.5
    %v1039 = vmul.f32 %v1031, 0.5
    %v1040 = vmul.f32 %v1032, 0.5
    %v1041 = vmul.f32 %v1033, 0.5
    %v1042 = vmul.f32 %v1034, 0.5
    %v1043 = vmul.f32 %v1035, 0.5
    %v1044 = vmul.f32 %v1036, 0.5
    %v1045 = vmul.f32 %v1037, 0.5
    %v1046 = vmul.f32 %v954, %v1038
    %v1047 = vmul.f32 %v973, %v1039
    %v1048 = vmul.f32 %v956, %v1040
    %v1049 = vmul.f32 %v975, %v1041
    %v1050 = vmul.f32 %v959, %v1042
    %v1051 = vmul.f32 %v978, %v1043
    %v1052 = vmul.f32 %v961, %v1044
    %v1053 = vmul.f32 %v980, %v1045
    %v1054 = vpack.c.bf16 %v1048, %v1046
    %v1055 = vpack.c.bf16 %v1049, %v1047
    %v1056 = vpack.c.bf16 %v1052, %v1050
    %v1057 = vpack.c.bf16 %v1053, %v1051
    %v1058 = vld [vmem:[#allocation11] sm:$0xf]
    %v1059 = vld [vmem:[#allocation11 + $0x4] sm:$0xf]
    %v1060 = vld [vmem:[#allocation11 + $0x8] sm:$0xf]
    %v1061 = vld [vmem:[#allocation11 + $0xc] sm:$0xf]
    %v1062 = vld [vmem:[#allocation11 + $0x10] sm:$0xf]
    %v1063 = vld [vmem:[#allocation11 + $0x14] sm:$0xf]
    %v1064 = vld [vmem:[#allocation11 + $0x18] sm:$0xf]
    %v1065 = vld [vmem:[#allocation11 + $0x1c] sm:$0xf]
    %v1066 = vld [vmem:[#allocation11 + $0x20] sm:$0xf]
    %v1067 = vld [vmem:[#allocation11 + $0x24] sm:$0xf]
    %v1068 = vld [vmem:[#allocation11 + $0x28] sm:$0xf]
    %v1069 = vld [vmem:[#allocation11 + $0x2c] sm:$0xf]
    %v1070 = vld [vmem:[#allocation11 + $0x30] sm:$0xf]
    %v1071 = vld [vmem:[#allocation11 + $0x34] sm:$0xf]
    %v1072 = vld [vmem:[#allocation11 + $0x38] sm:$0xf]
    %v1073 = vld [vmem:[#allocation11 + $0x3c] sm:$0xf]
    %v1074 = vld [vmem:[#allocation11 + $0x40] sm:$0xf]
    %v1075 = vld [vmem:[#allocation11 + $0x44] sm:$0xf]
    %v1076 = vld [vmem:[#allocation11 + $0x48] sm:$0xf]
    %v1077 = vld [vmem:[#allocation11 + $0x4c] sm:$0xf]
    %v1078 = vld [vmem:[#allocation11 + $0x50] sm:$0xf]
    %v1079 = vld [vmem:[#allocation11 + $0x54] sm:$0xf]
    %v1080 = vld [vmem:[#allocation11 + $0x58] sm:$0xf]
    %v1081 = vld [vmem:[#allocation11 + $0x5c] sm:$0xf]
    %v1082 = vld [vmem:[#allocation11 + $0x60] sm:$0xf]
    %v1083 = vld [vmem:[#allocation11 + $0x64] sm:$0xf]
    %v1084 = vld [vmem:[#allocation11 + $0x68] sm:$0xf]
    %v1085 = vld [vmem:[#allocation11 + $0x6c] sm:$0xf]
    %v1086 = vld [vmem:[#allocation11 + $0x70] sm:$0xf]
    %v1087 = vld [vmem:[#allocation11 + $0x74] sm:$0xf]
    %v1088 = vld [vmem:[#allocation11 + $0x78] sm:$0xf]
    %v1089 = vld [vmem:[#allocation11 + $0x7c] sm:$0xf]
    %v1090 = vperm.slane %v138, 1
    %v1123 = vunpack.c.l.b16 %v1058
    %v1124 = vunpack.c.l.b16 %v1059
    %v1125 = vunpack.c.l.b16 %v1060
    %v1126 = vunpack.c.l.b16 %v1061
    %v1127 = vunpack.c.l.b16 %v1062
    %v1128 = vunpack.c.l.b16 %v1063
    %v1129 = vunpack.c.l.b16 %v1064
    %v1130 = vunpack.c.l.b16 %v1065
    %v1131 = vunpack.c.l.b16 %v1066
    %v1132 = vunpack.c.l.b16 %v1067
    %v1133 = vunpack.c.l.b16 %v1068
    %v1134 = vunpack.c.l.b16 %v1069
    %v1135 = vunpack.c.l.b16 %v1070
    %v1136 = vunpack.c.l.b16 %v1071
    %v1137 = vunpack.c.l.b16 %v1072
    %v1138 = vunpack.c.l.b16 %v1073
    %v1139 = vunpack.c.l.b16 %v1074
    %v1140 = vunpack.c.l.b16 %v1075
    %v1141 = vunpack.c.l.b16 %v1076
    %v1142 = vunpack.c.l.b16 %v1077
    %v1143 = vunpack.c.l.b16 %v1078
    %v1144 = vunpack.c.l.b16 %v1079
    %v1145 = vunpack.c.l.b16 %v1080
    %v1146 = vunpack.c.l.b16 %v1081
    %v1147 = vunpack.c.l.b16 %v1082
    %v1148 = vunpack.c.l.b16 %v1083
    %v1149 = vunpack.c.l.b16 %v1084
    %v1150 = vunpack.c.l.b16 %v1085
    %v1151 = vunpack.c.l.b16 %v1086
    %v1152 = vunpack.c.l.b16 %v1087
    %v1153 = vunpack.c.l.b16 %v1088
    %v1154 = vunpack.c.l.b16 %v1089
    %v1155 = vpack.c.b16 %v1124, %v1123
    %v1156 = vpack.c.b16 %v1126, %v1125
    %v1157 = vpack.c.b16 %v1128, %v1127
    %v1158 = vpack.c.b16 %v1130, %v1129
    %v1159 = vpack.c.b16 %v1132, %v1131
    %v1160 = vpack.c.b16 %v1134, %v1133
    %v1161 = vpack.c.b16 %v1136, %v1135
    %v1162 = vpack.c.b16 %v1138, %v1137
    %v1163 = vpack.c.b16 %v1140, %v1139
    %v1164 = vpack.c.b16 %v1142, %v1141
    %v1165 = vpack.c.b16 %v1144, %v1143
    %v1166 = vpack.c.b16 %v1146, %v1145
    %v1167 = vpack.c.b16 %v1148, %v1147
    %v1168 = vpack.c.b16 %v1150, %v1149
    %v1169 = vpack.c.b16 %v1152, %v1151
    %v1170 = vpack.c.b16 %v1154, %v1153
    %1187 = vmatpush.bf16.msra.mxu0 %v1162
    %1188 = vmatpush.bf16.msra.mxu0 %v1161
    %1189 = vmatpush.bf16.msra.mxu0 %v1160
    %1190 = vmatpush.bf16.msra.mxu0 %v1159
    %1191 = vmatpush.bf16.msra.mxu0 %v1158
    %1192 = vmatpush.bf16.msra.mxu0 %v1157
    %1193 = vmatpush.bf16.msra.mxu0 %v1156
    %1194 = vmatpush.bf16.msra.mxu0 %v1155
    %1195 = vmatmul.bf16.gmra.mxu0 %v1054
    %v1196 = vpop.f32.mrf.mxu0
    %v1197 = vadd.f32 %v1090, %v1196
    %v1198 = vpop.f32.mrf.mxu0
    %v1199 = vadd.f32 %v1090, %v1198
    %1200 = vmatmul.bf16.gmra.mxu0 %v1056
    %v1201 = vpop.f32.mrf.mxu0
    %v1202 = vadd.f32 %v1090, %v1201
    %v1203 = vpop.f32.mrf.mxu0
    %v1204 = vadd.f32 %v1090, %v1203
    %1205 = vdwg.mxu0
    %1206 = vmatpush.bf16.msra.mxu0 %v1170
    %1207 = vmatpush.bf16.msra.mxu0 %v1169
    %1208 = vmatpush.bf16.msra.mxu0 %v1168
    %1209 = vmatpush.bf16.msra.mxu0 %v1167
    %1210 = vmatpush.bf16.msra.mxu0 %v1166
    %1211 = vmatpush.bf16.msra.mxu0 %v1165
    %1212 = vmatpush.bf16.msra.mxu0 %v1164
    %1213 = vmatpush.bf16.msra.mxu0 %v1163
    %1214 = vmatmul.bf16.gmra.mxu0 %v1055
    %v1215 = vpop.f32.mrf.mxu0
    %v1216 = vadd.f32 %v1197, %v1215
    %v1217 = vpop.f32.mrf.mxu0
    %v1218 = vadd.f32 %v1199, %v1217
    %1219 = vmatmul.bf16.gmra.mxu0 %v1057
    %v1220 = vpop.f32.mrf.mxu0
    %v1221 = vadd.f32 %v1202, %v1220
    %v1222 = vpop.f32.mrf.mxu0
    %v1223 = vadd.f32 %v1204, %v1222
    %1224 = vdwg.mxu0
    %v1225 = vadd.f32 %v840, %v1216
    %v1226 = vadd.f32 %v841, %v1218
    %v1227 = vadd.f32 %v842, %v1221
    %v1228 = vadd.f32 %v843, %v1223
    %1229 = vadd.xlane.f32.xlu0 %v1225
    %v1230 = vpop.xlane.xlu0 %1229
    %1231 = vadd.xlane.f32.xlu0 %v1226
    %v1232 = vpop.xlane.xlu0 %1231
    %1233 = vadd.xlane.f32.xlu0 %v1227
    %v1234 = vpop.xlane.xlu0 %1233
    %1235 = vadd.xlane.f32.xlu0 %v1228
    %v1236 = vpop.xlane.xlu0 %1235
    %v1237 = vmul.f32 %v1230, %v158
    %v1238 = vmul.f32 %v1232, %v158
    %v1239 = vmul.f32 %v1234, %v158
    %v1240 = vmul.f32 %v1236, %v158
    %v1241 = vsub.f32 %v1225, %v1237
    %v1242 = vsub.f32 %v1226, %v1238
    %v1243 = vsub.f32 %v1227, %v1239
    %v1244 = vsub.f32 %v1228, %v1240
    %v1245 = vmul.f32 %v1241, %v1241
    %v1246 = vmul.f32 %v1242, %v1242
    %v1247 = vmul.f32 %v1243, %v1243
    %v1248 = vmul.f32 %v1244, %v1244
    %1249 = vadd.xlane.f32.xlu0 %v1245
    %v1250 = vpop.xlane.xlu0 %1249
    %1251 = vadd.xlane.f32.xlu0 %v1246
    %v1252 = vpop.xlane.xlu0 %1251
    %1253 = vadd.xlane.f32.xlu0 %v1247
    %v1254 = vpop.xlane.xlu0 %1253
    %1255 = vadd.xlane.f32.xlu0 %v1248
    %v1256 = vpop.xlane.xlu0 %1255
    %v1257 = vmul.f32 %v1250, %v158
    %v1258 = vmul.f32 %v1252, %v158
    %v1259 = vmul.f32 %v1254, %v158
    %v1260 = vmul.f32 %v1256, %v158
    %v1261 = vadd.f32 %v1257, 1e-12
    %v1262 = vadd.f32 %v1258, 1e-12
    %v1263 = vadd.f32 %v1259, 1e-12
    %v1264 = vadd.f32 %v1260, 1e-12
    %v1265 = vrsqrt.pop %v1261
    %v1266 = vmul.f32 %v1265, %v1261
    %v1267 = vmul.f32 %v1266, %v1265
    %v1268 = vmul.f32 0.5, %v1267
    %v1269 = vsub.f32 1.5, %v1268
    %v1270 = vmul.f32 %v1265, %v1269
    %vm1271 = vweird.f32 %v1261
    %vm1272 = vweird.f32 %v1265
    %vm1273 = vmor %vm1271, %vm1272
    %v1274 = vsel %vm1273, %v1265, %v1270
    %v1275 = vrsqrt.pop %v1262
    %v1276 = vmul.f32 %v1275, %v1262
    %v1277 = vmul.f32 %v1276, %v1275
    %v1278 = vmul.f32 0.5, %v1277
    %v1279 = vsub.f32 1.5, %v1278
    %v1280 = vmul.f32 %v1275, %v1279
    %vm1281 = vweird.f32 %v1262
    %vm1282 = vweird.f32 %v1275
    %vm1283 = vmor %vm1281, %vm1282
    %v1284 = vsel %vm1283, %v1275, %v1280
    %v1285 = vrsqrt.pop %v1263
    %v1286 = vmul.f32 %v1285, %v1263
    %v1287 = vmul.f32 %v1286, %v1285
    %v1288 = vmul.f32 0.5, %v1287
    %v1289 = vsub.f32 1.5, %v1288
    %v1290 = vmul.f32 %v1285, %v1289
    %vm1291 = vweird.f32 %v1263
    %vm1292 = vweird.f32 %v1285
    %vm1293 = vmor %vm1291, %vm1292
    %v1294 = vsel %vm1293, %v1285, %v1290
    %v1295 = vrsqrt.pop %v1264
    %v1296 = vmul.f32 %v1295, %v1264
    %v1297 = vmul.f32 %v1296, %v1295
    %v1298 = vmul.f32 0.5, %v1297
    %v1299 = vsub.f32 1.5, %v1298
    %v1300 = vmul.f32 %v1295, %v1299
    %vm1301 = vweird.f32 %v1264
    %vm1302 = vweird.f32 %v1295
    %vm1303 = vmor %vm1301, %vm1302
    %v1304 = vsel %vm1303, %v1295, %v1300
    %v1305 = vmul.f32 %v1241, %v1274
    %v1306 = vmul.f32 %v1242, %v1284
    %v1307 = vmul.f32 %v1243, %v1294
    %v1308 = vmul.f32 %v1244, %v1304
    %v1309 = vperm.slane %v138, 2
    %v1310 = vmul.f32 %v1305, %v1309
    %v1311 = vmul.f32 %v1306, %v1309
    %v1312 = vmul.f32 %v1307, %v1309
    %v1313 = vmul.f32 %v1308, %v1309
    %v1314 = vperm.slane %v138, 3
    %v1315 = vadd.f32 %v1310, %v1314
    %v1316 = vadd.f32 %v1311, %v1314
    %v1317 = vadd.f32 %v1312, %v1314
    %v1318 = vadd.f32 %v1313, %v1314
    %v1319 = vperm.slane %v138, 4
    %v1320 = vmul.f32 %v1315, %v1319
    %v1321 = vmul.f32 %v1316, %v1319
    %v1322 = vmul.f32 %v1317, %v1319
    %v1323 = vmul.f32 %v1318, %v1319
    %1324 = vadd.xlane.f32.xlu0 %v1320
    %v1325 = vpop.xlane.xlu0 %1324
    %1326 = vadd.xlane.f32.xlu0 %v1321
    %v1327 = vpop.xlane.xlu0 %1326
    %1328 = vadd.xlane.f32.xlu0 %v1322
    %v1329 = vpop.xlane.xlu0 %1328
    %1330 = vadd.xlane.f32.xlu0 %v1323
    %v1331 = vpop.xlane.xlu0 %1330
    %v1332 = vperm.slane %v138, 5
    %v1333 = vadd.f32 %v1325, %v1332
    %v1334 = vadd.f32 %v1327, %v1332
    %v1335 = vadd.f32 %v1329, %v1332
    %v1336 = vadd.f32 %v1331, %v1332
    %v1337 = vxor.u32 %v1333, 2147483648
    %v1338 = vxor.u32 %v1334, 2147483648
    %v1339 = vxor.u32 %v1335, 2147483648
    %v1340 = vxor.u32 %v1336, 2147483648
    %v1341 = vmul.f32 %v1337, 1.442695
    %v1342 = vpow.pop %v1341
    %v1343 = vmul.f32 %v1338, 1.442695
    %v1344 = vpow.pop %v1343
    %v1345 = vmul.f32 %v1339, 1.442695
    %v1346 = vpow.pop %v1345
    %v1347 = vmul.f32 %v1340, 1.442695
    %v1348 = vpow.pop %v1347
    %v1349 = vadd.f32 %v1342, 1.0
    %v1350 = vadd.f32 %v1344, 1.0
    %v1351 = vadd.f32 %v1346, 1.0
    %v1352 = vadd.f32 %v1348, 1.0
    %v1353 = vrcp.pop %v1349
    %v1354 = vmul.f32 %v1349, %v1353
    %v1355 = vsub.f32 1.0, %v1354
    %v1356 = vmul.f32 %v1353, %v1355
    %v1357 = vadd.f32 %v1353, %v1356
    %vm1358 = vweird.f32 %v1349
    %vm1359 = vweird.f32 %v1353
    %vm1360 = vmor %vm1358, %vm1359
    %v1361 = vsel %vm1360, %v1353, %v1357
    %v1362 = vand.u32 2147483647, %v1349
    %vm1363 = vcmp.eq.f32.partialorder %v1362, 8.507059e+37
    %v1364 = vand.u32 %v1349, 2147483648
    %v1365 = vor.u32 1.1754944e-38, %v1364
    %v1366 = vsel %vm1363, %v1365, %v1361
    %v1367 = vmul.f32 1.0, %v1366
    %v1368 = vrcp.pop %v1350
    %v1369 = vmul.f32 %v1350, %v1368
    %v1370 = vsub.f32 1.0, %v1369
    %v1371 = vmul.f32 %v1368, %v1370
    %v1372 = vadd.f32 %v1368, %v1371
    %vm1373 = vweird.f32 %v1350
    %vm1374 = vweird.f32 %v1368
    %vm1375 = vmor %vm1373, %vm1374
    %v1376 = vsel %vm1375, %v1368, %v1372
    %v1377 = vand.u32 2147483647, %v1350
    %vm1378 = vcmp.eq.f32.partialorder %v1377, 8.507059e+37
    %v1379 = vand.u32 %v1350, 2147483648
    %v1380 = vor.u32 1.1754944e-38, %v1379
    %v1381 = vsel %vm1378, %v1380, %v1376
    %v1382 = vmul.f32 1.0, %v1381
    %v1383 = vrcp.pop %v1351
    %v1384 = vmul.f32 %v1351, %v1383
    %v1385 = vsub.f32 1.0, %v1384
    %v1386 = vmul.f32 %v1383, %v1385
    %v1387 = vadd.f32 %v1383, %v1386
    %vm1388 = vweird.f32 %v1351
    %vm1389 = vweird.f32 %v1383
    %vm1390 = vmor %vm1388, %vm1389
    %v1391 = vsel %vm1390, %v1383, %v1387
    %v1392 = vand.u32 2147483647, %v1351
    %vm1393 = vcmp.eq.f32.partialorder %v1392, 8.507059e+37
    %v1394 = vand.u32 %v1351, 2147483648
    %v1395 = vor.u32 1.1754944e-38, %v1394
    %v1396 = vsel %vm1393, %v1395, %v1391
    %v1397 = vmul.f32 1.0, %v1396
    %v1398 = vrcp.pop %v1352
    %v1399 = vmul.f32 %v1352, %v1398
    %v1400 = vsub.f32 1.0, %v1399
    %v1401 = vmul.f32 %v1398, %v1400
    %v1402 = vadd.f32 %v1398, %v1401
    %vm1403 = vweird.f32 %v1352
    %vm1404 = vweird.f32 %v1398
    %vm1405 = vmor %vm1403, %vm1404
    %v1406 = vsel %vm1405, %v1398, %v1402
    %v1407 = vand.u32 2147483647, %v1352
    %vm1408 = vcmp.eq.f32.partialorder %v1407, 8.507059e+37
    %v1409 = vand.u32 %v1352, 2147483648
    %v1410 = vor.u32 1.1754944e-38, %v1409
    %v1411 = vsel %vm1408, %v1410, %v1406
    %v1412 = vmul.f32 1.0, %v1411
    %1417 = vset.pattern.permute.xlu0 0
    %1418 = vperm.xlu0 %1417, %v1367
    %v1419 = vpop.permute.xlu0 %1418
    %1420 = vset.pattern.permute.xlu0 0
    %1421 = vperm.xlu0 %1420, %v1382
    %v1422 = vpop.permute.xlu0 %1421
    %1423 = vset.pattern.permute.xlu0 0
    %1424 = vperm.xlu0 %1423, %v1397
    %v1425 = vpop.permute.xlu0 %1424
    %1426 = vset.pattern.permute.xlu0 0
    %1427 = vperm.xlu0 %1426, %v1412
    %v1428 = vpop.permute.xlu0 %1427
    %v1429 = vlaneseq
    %v1430 = vand.u32 %v1429, 127
    %v1431 = vperm.slane %v1419, %v1430
    %v1432 = vadd.s32 %v1430, 4294967288
    %v1433 = vperm.slane %v1422, %v1432
    %vm1434 = vcmask 130112
    %v1435 = vsel %vm1434, %v1433, %v1431
    %v1436 = vperm.slane %v1425, %v1430
    %v1437 = vperm.slane %v1428, %v1432
    %v1438 = vsel %vm1434, %v1437, %v1436
    %vm1439 = vcmask 1041409
    %v1440 = vsel %vm1439, %v1438, %v1435
    %vm1442 = vcmask 123904
    %1443 = vst.msk [vmem:[#allocation14] sm:$0x3] %vm1442, %v1440
    // Predicated region
    $region58: #{tpu_custom_call.1} parent=1 // pred_check
      _
    $region59: #{tpu_custom_call.1} parent=1 // pred_check_branch
      %1445 = sbr.rel (0) target = $region61
    $region60: #{tpu_custom_call.1} parent=1 // pred_region
      %1447 = vsyncadd [#allocation4], 0
      %s1449 = sshll.u32 [#allocation14], 4
      %s1450 = int_to_ptr.vmem [resolvable:$true] %s1449
      %s1451 = sshll.u32 %s7, 4
      %s1452 = int_to_ptr.hbm [resolvable:$true] %s1451
      %1454 = dma.vmem_to_hbm [thread:$0]  %s1450, 32, %s1452, [#allocation4]
    $region61: #{tpu_custom_call.1} parent=1 // pred_fallthru
      _
    // Predicated region
    $region62: #{tpu_custom_call.1} parent=1 // pred_check
      _
    $region63: #{tpu_custom_call.1} parent=1 // pred_check_branch
      %1456 = sbr.rel (0) target = $region65
    $region64: #{tpu_custom_call.1} parent=1 // pred_region
      %1458 = dma.done [#allocation4], 32
    $region65: #{tpu_custom_call.1} parent=1 // pred_fallthru
      _
    %1459 = vsyncpa [#allocation3], 1
    %1460 = vsyncpa [#allocation6], 1
    %1461 = vsyncpa [#allocation9], 1
    %1462 = vsyncpa [#allocation12], 1
    %1463 = vsyncpa [#allocation4], 1

</llo_original>
